<compile_context>
chip_gen: v7x
topology: tpu7x:2x2x1
jax: 0.10.0
libtpu: 0.0.40
codegen_flags: <defaults>
</compile_context>

<pallas_src>
import jax
import jax.numpy as jnp
from jax.experimental import pallas as pl
from jax.experimental.pallas import tpu as pltpu

# ---- concrete model dimensions --------------------------------------------
BATCH = 2
CIN = 4
H = W = 16
COUT = 8
KSIZE = 3
K_RAW = KSIZE * KSIZE * CIN        # 36  im2col contraction length
K_PAD = 128                        # contraction zero-padded to one lane tile
HW = H * W                         # 256 pixels per image
M = BATCH * HW                     # 512 conv "pixels" (lane dim of conv out)
FLAT = COUT * HW                   # 2048 flatten width (PyTorch NCHW order)
HID = 32
NOUT = 10
NOUT_PAD = 128                     # fc2 output padded to a full lane tile


def _fused_model_kernel(aT_ref, wcT_ref, cb_ref, w1_ref, b1_ref, w2_ref,
                        b2_ref, o_ref, flat_ref):
    # ---- conv1 as transposed matmul: (Cout, K) @ (K, N*H*W) -> (Cout, M) ----
    # bf16 MXU inputs, f32 accumulate; bias + ReLU epilogue in f32.
    convT = jnp.dot(wcT_ref[...], aT_ref[...],
                    preferred_element_type=jnp.float32)        # (8, 512) f32
    convT = jnp.maximum(convT + cb_ref[...], 0.0)

    # ---- flatten to (N, Cout*H*W) in PyTorch NCHW order, entirely in VMEM ---
    # flat[n, c*HW + p] = convT[c, n*HW + p]; built with static, lane-aligned
    # slice stores (no in-kernel reshape/transpose relayouts, no concat).
    for n in range(BATCH):
        for c in range(COUT):
            flat_ref[n:n + 1, c * HW:(c + 1) * HW] = (
                convT[c:c + 1, n * HW:(n + 1) * HW])

    # ---- fc1 + ReLU --------------------------------------------------------
    flat = flat_ref[...]                                        # (2, 2048) f32
    h1 = jnp.dot(flat.astype(jnp.bfloat16), w1_ref[...],
                 preferred_element_type=jnp.float32)            # (2, 32)
    h1 = jnp.maximum(h1 + b1_ref[...], 0.0)

    # ---- fc2 (output padded to 128 lanes -> unmasked full-width store) ------
    out = jnp.dot(h1.astype(jnp.bfloat16), w2_ref[...],
                  preferred_element_type=jnp.float32)           # (2, 128)
    o_ref[...] = (out + b2_ref[...]).astype(o_ref.dtype)


def _fused_forward(aT, kp):
    """Single pallas_call running conv1 + ReLU + flatten + fc1 + ReLU + fc2."""
    flops = 2 * (COUT * K_PAD * M + BATCH * FLAT * HID + BATCH * HID * NOUT_PAD)
    bytes_accessed = (K_PAD * M * 2 + COUT * K_PAD * 2 + COUT * 4
                      + FLAT * HID * 2 + HID * 4
                      + HID * NOUT_PAD * 2 + NOUT_PAD * 4
                      + BATCH * NOUT_PAD * 4)
    out_pad = pl.pallas_call(
        _fused_model_kernel,
        out_shape=jax.ShapeDtypeStruct((BATCH, NOUT_PAD), jnp.float32),
        grid=(1,),
        in_specs=[
            pl.BlockSpec((K_PAD, M), lambda i: (0, 0)),       # aT   (128, 512) bf16
            pl.BlockSpec((COUT, K_PAD), lambda i: (0, 0)),    # wcT  (8, 128)   bf16
            pl.BlockSpec((COUT, 1), lambda i: (0, 0)),        # conv bias (8,1) f32
            pl.BlockSpec((FLAT, HID), lambda i: (0, 0)),      # w1   (2048, 32) bf16
            pl.BlockSpec((1, HID), lambda i: (0, 0)),         # b1   (1, 32)    f32
            pl.BlockSpec((HID, NOUT_PAD), lambda i: (0, 0)),  # w2   (32, 128)  bf16
            pl.BlockSpec((1, NOUT_PAD), lambda i: (0, 0)),    # b2   (1, 128)   f32
        ],
        out_specs=pl.BlockSpec((BATCH, NOUT_PAD), lambda i: (0, 0)),
        scratch_shapes=[pltpu.VMEM((BATCH, FLAT), jnp.float32)],
        compiler_params=pltpu.CompilerParams(
            dimension_semantics=("arbitrary",)),
        cost_estimate=pl.CostEstimate(flops=flops, transcendentals=0,
                                      bytes_accessed=bytes_accessed),
    )(aT, kp["wcT"], kp["cb"], kp["w1"], kp["b1"], kp["w2"], kp["b2"])
    return out_pad[:, :NOUT]


def init_params(key):
    """Deterministic synthetic parameters, stored in PyTorch shape convention."""
    ks = jax.random.split(key, 6)
    scale = 0.05
    return {
        # nn.Conv2d(4, 8, 3, padding=1): weight (Cout, Cin, kH, kW)
        "conv1_w": scale * jax.random.normal(ks[0], (COUT, CIN, 3, 3), jnp.float32),
        "conv1_b": scale * jax.random.normal(ks[1], (COUT,), jnp.float32),
        # nn.Linear(2048, 32): weight (out_features, in_features)
        "fc1_w": scale * jax.random.normal(ks[2], (HID, FLAT), jnp.float32),
        "fc1_b": scale * jax.random.normal(ks[3], (HID,), jnp.float32),
        # nn.Linear(32, 10)
        "fc2_w": scale * jax.random.normal(ks[4], (NOUT, HID), jnp.float32),
        "fc2_b": scale * jax.random.normal(ks[5], (NOUT,), jnp.float32),
    }


def prepare_kernel_params(params):
    """One-time weight layout transforms, hoisted out of the forward path."""
    # conv weight (Cout,Cin,kH,kW) -> (Cout,kH,kW,Cin) -> (Cout, 9*Cin), pad K.
    wcT = jnp.transpose(params["conv1_w"], (0, 2, 3, 1)).reshape(COUT, K_RAW)
    wcT = jnp.pad(wcT, ((0, 0), (0, K_PAD - K_RAW))).astype(jnp.bfloat16)
    # fc1 (out,in) -> (in,out); the kernel flatten already matches PyTorch's
    # NCHW flatten order, so no column permutation is needed.
    w1 = params["fc1_w"].T.astype(jnp.bfloat16)                     # (2048, 32)
    # fc2 (out,in) -> (in,out), output dim zero-padded to 128 lanes.
    w2 = jnp.pad(params["fc2_w"].T,
                 ((0, 0), (0, NOUT_PAD - NOUT))).astype(jnp.bfloat16)
    b2 = jnp.pad(params["fc2_b"], (0, NOUT_PAD - NOUT)).astype(jnp.float32)
    return {
        "wcT": wcT,
        "cb": params["conv1_b"].reshape(COUT, 1).astype(jnp.float32),
        "w1": w1,
        "b1": params["fc1_b"].reshape(1, HID).astype(jnp.float32),
        "w2": w2,
        "b2": b2.reshape(1, NOUT_PAD),
    }


@jax.jit
def verbose_forward(kparams, x_nchw):
    """Equivalent of VerboseExecution(model)(x).

    The wrapped model's forward hooks print each named child's output shape.
    Shapes are static here, so the host prints below fire at trace time (once
    per jit trace) and reproduce that side effect; the conv1 hook sees the
    conv module's own (post-conv, pre-functional-ReLU) output -- same shape.
    """
    bsz, cin, hh, ww = x_nchw.shape                     # static under jit

    # im2col glue (plain XLA, fused by jit): NCHW -> NHWC, pad, 3x3 patches,
    # transpose so the contraction dim K is on sublanes and pixels on lanes.
    x_nhwc = jnp.transpose(x_nchw, (0, 2, 3, 1))
    xp = jnp.pad(x_nhwc, ((0, 0), (1, 1), (1, 1), (0, 0)))
    patches = jnp.concatenate(
        [xp[:, dy:dy + hh, dx:dx + ww, :] for dy in range(3) for dx in range(3)],
        axis=-1)                                        # (N, H, W, 9*Cin)
    aT = patches.reshape(bsz * hh * ww, KSIZE * KSIZE * cin).T   # (36, N*H*W)
    aT = jnp.pad(aT, ((0, K_PAD - KSIZE * KSIZE * cin), (0, 0))).astype(jnp.bfloat16)

    out = _fused_forward(aT, kparams)                   # (N, 10)

    # Forward-hook side effects of the named children (shape-only, trace-time):
    print(f"conv1: {(bsz, COUT, hh, ww)}")
    print(f"fc1: {(bsz, HID)}")
    print(f"fc2: {(bsz, NOUT)}")
    return out


def reference_forward(params, x_nchw):
    """Independent pure-JAX reference (f32) of the wrapped model's forward."""
    conv = jax.lax.conv_general_dilated(
        x_nchw, params["conv1_w"], window_strides=(1, 1), padding="SAME",
        dimension_numbers=("NCHW", "OIHW", "NCHW"))
    conv = jax.nn.relu(conv + params["conv1_b"][None, :, None, None])
    flat = conv.reshape(x_nchw.shape[0], -1)
    h1 = jax.nn.relu(flat @ params["fc1_w"].T + params["fc1_b"])
    return h1 @ params["fc2_w"].T + params["fc2_b"]


if __name__ == "__main__":
    x = jax.random.normal(jax.random.PRNGKey(0), (BATCH, CIN, H, W), jnp.float32)
    params = init_params(jax.random.PRNGKey(42))
    kparams = prepare_kernel_params(params)             # one-time layout prep

    out = verbose_forward(kparams, x)
    out = jax.block_until_ready(out)

    assert out.shape == (BATCH, NOUT), out.shape
    assert out.dtype == jnp.float32

    ref = reference_forward(params, x)
    err = float(jnp.max(jnp.abs(out - ref)))
    assert err < 3e-2, f"max abs error vs reference: {err}"

    print("KERNEL_OK")
</pallas_src>

<mosaic_0001>
module attributes {stable_mosaic.version = 11 : i64} {
  func.func @_fused_model_kernel(%arg0: i32, %arg1: memref<128x512xbf16, #tpu.memory_space<vmem>>, %arg2: memref<8x128xbf16, #tpu.memory_space<vmem>>, %arg3: memref<8x1xf32, #tpu.memory_space<vmem>>, %arg4: memref<2048x32xbf16, #tpu.memory_space<vmem>>, %arg5: memref<1x32xf32, #tpu.memory_space<vmem>>, %arg6: memref<32x128xbf16, #tpu.memory_space<vmem>>, %arg7: memref<1x128xf32, #tpu.memory_space<vmem>>, %arg8: memref<2x128xf32, #tpu.memory_space<vmem>>, %arg9: memref<2x2048xf32, #tpu.memory_space<vmem>>) attributes {dimension_semantics = [#tpu.dimension_semantics<arbitrary>], iteration_bounds = array<i64: 1>, scalar_prefetch = 0 : i64, scratch_operands = 1 : i64, tpu.core_type = #tpu.core_type<tc>, window_params = [{pipeline_mode = #tpu.pipeline_mode<synchronous>, transform_indices = @transform_0, window_bounds = array<i64: 128, 512>}, {pipeline_mode = #tpu.pipeline_mode<synchronous>, transform_indices = @transform_1, window_bounds = array<i64: 8, 128>}, {pipeline_mode = #tpu.pipeline_mode<synchronous>, transform_indices = @transform_2, window_bounds = array<i64: 8, 1>}, {pipeline_mode = #tpu.pipeline_mode<synchronous>, transform_indices = @transform_3, window_bounds = array<i64: 2048, 32>}, {pipeline_mode = #tpu.pipeline_mode<synchronous>, transform_indices = @transform_4, window_bounds = array<i64: 1, 32>}, {pipeline_mode = #tpu.pipeline_mode<synchronous>, transform_indices = @transform_5, window_bounds = array<i64: 32, 128>}, {pipeline_mode = #tpu.pipeline_mode<synchronous>, transform_indices = @transform_6, window_bounds = array<i64: 1, 128>}, {pipeline_mode = #tpu.pipeline_mode<synchronous>, transform_indices = @transform_7, window_bounds = array<i64: 2, 128>}]} {
    %c0 = arith.constant 0 : index
    %c0_0 = arith.constant 0 : index
    %0 = vector.load %arg2[%c0, %c0_0] : memref<8x128xbf16, #tpu.memory_space<vmem>>, vector<8x128xbf16>
    %c0_1 = arith.constant 0 : index
    %c0_2 = arith.constant 0 : index
    %1 = vector.load %arg1[%c0_1, %c0_2] : memref<128x512xbf16, #tpu.memory_space<vmem>>, vector<128x512xbf16>
    %cst = arith.constant dense<0.000000e+00> : vector<8x512xf32>
    %2 = tpu.matmul %0, %1, %cst {dimension_numbers = #tpu.dot_dimension_numbers<[1], [0], [0], [1], [0, 0, 1, 1], [], []>} : vector<8x128xbf16>, vector<128x512xbf16>, vector<8x512xf32> -> vector<8x512xf32>
    %c0_3 = arith.constant 0 : index
    %c0_4 = arith.constant 0 : index
    %3 = vector.load %arg3[%c0_3, %c0_4] : memref<8x1xf32, #tpu.memory_space<vmem>>, vector<8x1xf32>
    %4 = vector.broadcast %3 : vector<8x1xf32> to vector<8x512xf32>
    %5 = arith.addf %2, %4 : vector<8x512xf32>
    %cst_5 = arith.constant 0.000000e+00 : f32
    %6 = vector.broadcast %cst_5 : f32 to vector<8x512xf32>
    %7 = arith.maximumf %5, %6 : vector<8x512xf32>
    %8 = vector.extract_strided_slice %7 {offsets = [0, 0], sizes = [1, 256], strides = [1, 1]} : vector<8x512xf32> to vector<1x256xf32>
    %c0_6 = arith.constant 0 : index
    %c0_7 = arith.constant 0 : index
    %9 = vector.load %arg9[%c0_6, %c0_7] : memref<2x2048xf32, #tpu.memory_space<vmem>>, vector<1x256xf32>
    tpu.vector_store %arg9[%c0_6, %c0_7], %8 {strides = array<i32>} : memref<2x2048xf32, #tpu.memory_space<vmem>>, vector<1x256xf32>,
    %10 = vector.extract_strided_slice %7 {offsets = [1, 0], sizes = [1, 256], strides = [1, 1]} : vector<8x512xf32> to vector<1x256xf32>
    %c0_8 = arith.constant 0 : index
    %c256 = arith.constant 256 : index
    %11 = vector.load %arg9[%c0_8, %c256] : memref<2x2048xf32, #tpu.memory_space<vmem>>, vector<1x256xf32>
    tpu.vector_store %arg9[%c0_8, %c256], %10 {strides = array<i32>} : memref<2x2048xf32, #tpu.memory_space<vmem>>, vector<1x256xf32>,
    %12 = vector.extract_strided_slice %7 {offsets = [2, 0], sizes = [1, 256], strides = [1, 1]} : vector<8x512xf32> to vector<1x256xf32>
    %c0_9 = arith.constant 0 : index
    %c512 = arith.constant 512 : index
    %13 = vector.load %arg9[%c0_9, %c512] : memref<2x2048xf32, #tpu.memory_space<vmem>>, vector<1x256xf32>
    tpu.vector_store %arg9[%c0_9, %c512], %12 {strides = array<i32>} : memref<2x2048xf32, #tpu.memory_space<vmem>>, vector<1x256xf32>,
    %14 = vector.extract_strided_slice %7 {offsets = [3, 0], sizes = [1, 256], strides = [1, 1]} : vector<8x512xf32> to vector<1x256xf32>
    %c0_10 = arith.constant 0 : index
    %c768 = arith.constant 768 : index
    %15 = vector.load %arg9[%c0_10, %c768] : memref<2x2048xf32, #tpu.memory_space<vmem>>, vector<1x256xf32>
    tpu.vector_store %arg9[%c0_10, %c768], %14 {strides = array<i32>} : memref<2x2048xf32, #tpu.memory_space<vmem>>, vector<1x256xf32>,
    %16 = vector.extract_strided_slice %7 {offsets = [4, 0], sizes = [1, 256], strides = [1, 1]} : vector<8x512xf32> to vector<1x256xf32>
    %c0_11 = arith.constant 0 : index
    %c1024 = arith.constant 1024 : index
    %17 = vector.load %arg9[%c0_11, %c1024] : memref<2x2048xf32, #tpu.memory_space<vmem>>, vector<1x256xf32>
    tpu.vector_store %arg9[%c0_11, %c1024], %16 {strides = array<i32>} : memref<2x2048xf32, #tpu.memory_space<vmem>>, vector<1x256xf32>,
    %18 = vector.extract_strided_slice %7 {offsets = [5, 0], sizes = [1, 256], strides = [1, 1]} : vector<8x512xf32> to vector<1x256xf32>
    %c0_12 = arith.constant 0 : index
    %c1280 = arith.constant 1280 : index
    %19 = vector.load %arg9[%c0_12, %c1280] : memref<2x2048xf32, #tpu.memory_space<vmem>>, vector<1x256xf32>
    tpu.vector_store %arg9[%c0_12, %c1280], %18 {strides = array<i32>} : memref<2x2048xf32, #tpu.memory_space<vmem>>, vector<1x256xf32>,
    %20 = vector.extract_strided_slice %7 {offsets = [6, 0], sizes = [1, 256], strides = [1, 1]} : vector<8x512xf32> to vector<1x256xf32>
    %c0_13 = arith.constant 0 : index
    %c1536 = arith.constant 1536 : index
    %21 = vector.load %arg9[%c0_13, %c1536] : memref<2x2048xf32, #tpu.memory_space<vmem>>, vector<1x256xf32>
    tpu.vector_store %arg9[%c0_13, %c1536], %20 {strides = array<i32>} : memref<2x2048xf32, #tpu.memory_space<vmem>>, vector<1x256xf32>,
    %22 = vector.extract_strided_slice %7 {offsets = [7, 0], sizes = [1, 256], strides = [1, 1]} : vector<8x512xf32> to vector<1x256xf32>
    %c0_14 = arith.constant 0 : index
    %c1792 = arith.constant 1792 : index
    %23 = vector.load %arg9[%c0_14, %c1792] : memref<2x2048xf32, #tpu.memory_space<vmem>>, vector<1x256xf32>
    tpu.vector_store %arg9[%c0_14, %c1792], %22 {strides = array<i32>} : memref<2x2048xf32, #tpu.memory_space<vmem>>, vector<1x256xf32>,
    %24 = vector.extract_strided_slice %7 {offsets = [0, 256], sizes = [1, 256], strides = [1, 1]} : vector<8x512xf32> to vector<1x256xf32>
    %c1 = arith.constant 1 : index
    %c0_15 = arith.constant 0 : index
    %25 = vector.load %arg9[%c1, %c0_15] : memref<2x2048xf32, #tpu.memory_space<vmem>>, vector<1x256xf32>
    tpu.vector_store %arg9[%c1, %c0_15], %24 {strides = array<i32>} : memref<2x2048xf32, #tpu.memory_space<vmem>>, vector<1x256xf32>,
    %26 = vector.extract_strided_slice %7 {offsets = [1, 256], sizes = [1, 256], strides = [1, 1]} : vector<8x512xf32> to vector<1x256xf32>
    %c1_16 = arith.constant 1 : index
    %c256_17 = arith.constant 256 : index
    %27 = vector.load %arg9[%c1_16, %c256_17] : memref<2x2048xf32, #tpu.memory_space<vmem>>, vector<1x256xf32>
    tpu.vector_store %arg9[%c1_16, %c256_17], %26 {strides = array<i32>} : memref<2x2048xf32, #tpu.memory_space<vmem>>, vector<1x256xf32>,
    %28 = vector.extract_strided_slice %7 {offsets = [2, 256], sizes = [1, 256], strides = [1, 1]} : vector<8x512xf32> to vector<1x256xf32>
    %c1_18 = arith.constant 1 : index
    %c512_19 = arith.constant 512 : index
    %29 = vector.load %arg9[%c1_18, %c512_19] : memref<2x2048xf32, #tpu.memory_space<vmem>>, vector<1x256xf32>
    tpu.vector_store %arg9[%c1_18, %c512_19], %28 {strides = array<i32>} : memref<2x2048xf32, #tpu.memory_space<vmem>>, vector<1x256xf32>,
    %30 = vector.extract_strided_slice %7 {offsets = [3, 256], sizes = [1, 256], strides = [1, 1]} : vector<8x512xf32> to vector<1x256xf32>
    %c1_20 = arith.constant 1 : index
    %c768_21 = arith.constant 768 : index
    %31 = vector.load %arg9[%c1_20, %c768_21] : memref<2x2048xf32, #tpu.memory_space<vmem>>, vector<1x256xf32>
    tpu.vector_store %arg9[%c1_20, %c768_21], %30 {strides = array<i32>} : memref<2x2048xf32, #tpu.memory_space<vmem>>, vector<1x256xf32>,
    %32 = vector.extract_strided_slice %7 {offsets = [4, 256], sizes = [1, 256], strides = [1, 1]} : vector<8x512xf32> to vector<1x256xf32>
    %c1_22 = arith.constant 1 : index
    %c1024_23 = arith.constant 1024 : index
    %33 = vector.load %arg9[%c1_22, %c1024_23] : memref<2x2048xf32, #tpu.memory_space<vmem>>, vector<1x256xf32>
    tpu.vector_store %arg9[%c1_22, %c1024_23], %32 {strides = array<i32>} : memref<2x2048xf32, #tpu.memory_space<vmem>>, vector<1x256xf32>,
    %34 = vector.extract_strided_slice %7 {offsets = [5, 256], sizes = [1, 256], strides = [1, 1]} : vector<8x512xf32> to vector<1x256xf32>
    %c1_24 = arith.constant 1 : index
    %c1280_25 = arith.constant 1280 : index
    %35 = vector.load %arg9[%c1_24, %c1280_25] : memref<2x2048xf32, #tpu.memory_space<vmem>>, vector<1x256xf32>
    tpu.vector_store %arg9[%c1_24, %c1280_25], %34 {strides = array<i32>} : memref<2x2048xf32, #tpu.memory_space<vmem>>, vector<1x256xf32>,
    %36 = vector.extract_strided_slice %7 {offsets = [6, 256], sizes = [1, 256], strides = [1, 1]} : vector<8x512xf32> to vector<1x256xf32>
    %c1_26 = arith.constant 1 : index
    %c1536_27 = arith.constant 1536 : index
    %37 = vector.load %arg9[%c1_26, %c1536_27] : memref<2x2048xf32, #tpu.memory_space<vmem>>, vector<1x256xf32>
    tpu.vector_store %arg9[%c1_26, %c1536_27], %36 {strides = array<i32>} : memref<2x2048xf32, #tpu.memory_space<vmem>>, vector<1x256xf32>,
    %38 = vector.extract_strided_slice %7 {offsets = [7, 256], sizes = [1, 256], strides = [1, 1]} : vector<8x512xf32> to vector<1x256xf32>
    %c1_28 = arith.constant 1 : index
    %c1792_29 = arith.constant 1792 : index
    %39 = vector.load %arg9[%c1_28, %c1792_29] : memref<2x2048xf32, #tpu.memory_space<vmem>>, vector<1x256xf32>
    tpu.vector_store %arg9[%c1_28, %c1792_29], %38 {strides = array<i32>} : memref<2x2048xf32, #tpu.memory_space<vmem>>, vector<1x256xf32>,
    %c0_30 = arith.constant 0 : index
    %c0_31 = arith.constant 0 : index
    %40 = vector.load %arg9[%c0_30, %c0_31] : memref<2x2048xf32, #tpu.memory_space<vmem>>, vector<2x2048xf32>
    %41 = arith.truncf %40 : vector<2x2048xf32> to vector<2x2048xbf16>
    %c0_32 = arith.constant 0 : index
    %c0_33 = arith.constant 0 : index
    %42 = vector.load %arg4[%c0_32, %c0_33] : memref<2048x32xbf16, #tpu.memory_space<vmem>>, vector<2048x32xbf16>
    %cst_34 = arith.constant dense<0.000000e+00> : vector<2x32xf32>
    %43 = tpu.matmul %41, %42, %cst_34 {dimension_numbers = #tpu.dot_dimension_numbers<[1], [0], [0], [1], [0, 0, 1, 1], [], []>} : vector<2x2048xbf16>, vector<2048x32xbf16>, vector<2x32xf32> -> vector<2x32xf32>
    %c0_35 = arith.constant 0 : index
    %c0_36 = arith.constant 0 : index
    %44 = vector.load %arg5[%c0_35, %c0_36] : memref<1x32xf32, #tpu.memory_space<vmem>>, vector<1x32xf32>
    %45 = vector.broadcast %44 : vector<1x32xf32> to vector<2x32xf32>
    %46 = arith.addf %43, %45 : vector<2x32xf32>
    %cst_37 = arith.constant 0.000000e+00 : f32
    %47 = vector.broadcast %cst_37 : f32 to vector<2x32xf32>
    %48 = arith.maximumf %46, %47 : vector<2x32xf32>
    %49 = arith.truncf %48 : vector<2x32xf32> to vector<2x32xbf16>
    %c0_38 = arith.constant 0 : index
    %c0_39 = arith.constant 0 : index
    %50 = vector.load %arg6[%c0_38, %c0_39] : memref<32x128xbf16, #tpu.memory_space<vmem>>, vector<32x128xbf16>
    %cst_40 = arith.constant dense<0.000000e+00> : vector<2x128xf32>
    %51 = tpu.matmul %49, %50, %cst_40 {dimension_numbers = #tpu.dot_dimension_numbers<[1], [0], [0], [1], [0, 0, 1, 1], [], []>} : vector<2x32xbf16>, vector<32x128xbf16>, vector<2x128xf32> -> vector<2x128xf32>
    %c0_41 = arith.constant 0 : index
    %c0_42 = arith.constant 0 : index
    %52 = vector.load %arg7[%c0_41, %c0_42] : memref<1x128xf32, #tpu.memory_space<vmem>>, vector<1x128xf32>
    %53 = vector.broadcast %52 : vector<1x128xf32> to vector<2x128xf32>
    %54 = arith.addf %51, %53 : vector<2x128xf32>
    %c0_43 = arith.constant 0 : index
    %c0_44 = arith.constant 0 : index
    %55 = vector.load %arg8[%c0_43, %c0_44] : memref<2x128xf32, #tpu.memory_space<vmem>>, vector<2x128xf32>
    tpu.vector_store %arg8[%c0_43, %c0_44], %54 {strides = array<i32>} : memref<2x128xf32, #tpu.memory_space<vmem>>, vector<2x128xf32>,
    return
  }
  func.func @transform_0(%arg0: i32) -> (i32, i32) {
    %c0_i32 = arith.constant 0 : i32
    %c0_i32_0 = arith.constant 0 : i32
    %c0_i32_1 = arith.constant 0 : i32
    return %c0_i32, %c0_i32_0 : i32, i32
  }
  func.func @transform_1(%arg0: i32) -> (i32, i32) {
    %c0_i32 = arith.constant 0 : i32
    %c0_i32_0 = arith.constant 0 : i32
    %c0_i32_1 = arith.constant 0 : i32
    return %c0_i32, %c0_i32_0 : i32, i32
  }
  func.func @transform_2(%arg0: i32) -> (i32, i32) {
    %c0_i32 = arith.constant 0 : i32
    %c0_i32_0 = arith.constant 0 : i32
    %c0_i32_1 = arith.constant 0 : i32
    return %c0_i32, %c0_i32_0 : i32, i32
  }
  func.func @transform_3(%arg0: i32) -> (i32, i32) {
    %c0_i32 = arith.constant 0 : i32
    %c0_i32_0 = arith.constant 0 : i32
    %c0_i32_1 = arith.constant 0 : i32
    return %c0_i32, %c0_i32_0 : i32, i32
  }
  func.func @transform_4(%arg0: i32) -> (i32, i32) {
    %c0_i32 = arith.constant 0 : i32
    %c0_i32_0 = arith.constant 0 : i32
    %c0_i32_1 = arith.constant 0 : i32
    return %c0_i32, %c0_i32_0 : i32, i32
  }
  func.func @transform_5(%arg0: i32) -> (i32, i32) {
    %c0_i32 = arith.constant 0 : i32
    %c0_i32_0 = arith.constant 0 : i32
    %c0_i32_1 = arith.constant 0 : i32
    return %c0_i32, %c0_i32_0 : i32, i32
  }
  func.func @transform_6(%arg0: i32) -> (i32, i32) {
    %c0_i32 = arith.constant 0 : i32
    %c0_i32_0 = arith.constant 0 : i32
    %c0_i32_1 = arith.constant 0 : i32
    return %c0_i32, %c0_i32_0 : i32, i32
  }
  func.func @transform_7(%arg0: i32) -> (i32, i32) {
    %c0_i32 = arith.constant 0 : i32
    %c0_i32_0 = arith.constant 0 : i32
    %c0_i32_1 = arith.constant 0 : i32
    return %c0_i32, %c0_i32_0 : i32, i32
  }
}

</mosaic_0001>

<llo_original>
// kernel: verbose_forward.1
$region0: #{verbose_forward.1}
  #allocation0 [shape = 'u32[]', space=smem, size = 0x4, offset = 0x4, fixed_abs, tag = 'smem constant byte address 0x4 - core index']
  #allocation1 [shape = 'u32[144,128]{1,0:T(1,128)}', space=vmem, size = 0x12000, scoped, tag = 'internal scratch']
  #allocation2 [shape = 'f32[2,2048]{1,0:T(2,128)}', space=vmem, size = 0x4000, scoped, tag = 'scratch operand']
  %s0 = inlined_call_operand.vmem [shape: bf16[128,512], index: 0, kind: input, shape index: {}]
  %s1 = inlined_call_operand.vmem [shape: bf16[8,128], index: 1, kind: input, shape index: {}]
  %s2 = inlined_call_operand.vmem [shape: f32[8,1], index: 2, kind: input, shape index: {}]
  %s3 = inlined_call_operand.vmem [shape: bf16[2048,32], index: 3, kind: input, shape index: {}]
  %s4 = inlined_call_operand.vmem [shape: f32[1,32], index: 4, kind: input, shape index: {}]
  %s5 = inlined_call_operand.vmem [shape: bf16[32,128], index: 5, kind: input, shape index: {}]
  %s6 = inlined_call_operand.vmem [shape: f32[1,128], index: 6, kind: input, shape index: {}]
  %s7 = inlined_call_operand.hbm [shape: f32[2,128], index: 7, kind: output, shape index: {}]
  %s8 = sld [smem:[#allocation0]]
  $region38: #{verbose_forward.1} parent=0
    _
  %s10 = ssub.s32 1, %s8
  %s11 = scalar_select 0, %s10, %s8
  $region1: #{verbose_forward.1} parent=0
    #allocation3 [shape = 'u8[1024]{0}', space=vmem, size = 0x400, scoped, tag = 'output window, operand 0, single buffered']
    #allocation4 [shape = 's32[1]{0}', space=sflag, size = 0x4, scoped, tag = 'scoped memory for verbose_forward.1']
    %12 = vsyncpa [#allocation4], 0
    // Predicated region
    $region2: #{verbose_forward.1} parent=1 // pred_check
      _
    $region3: #{verbose_forward.1} parent=1 // pred_check_branch
      %14 = sbr.rel (0) target = $region5
    $region4: #{verbose_forward.1} parent=1 // pred_region
      _
    $region5: #{verbose_forward.1} parent=1 // pred_fallthru
      _
    // Predicated region
    $region6: #{verbose_forward.1} parent=1 // pred_check
      _
    $region7: #{verbose_forward.1} parent=1 // pred_check_branch
      %16 = sbr.rel (0) target = $region9
    $region8: #{verbose_forward.1} parent=1 // pred_region
      _
    $region9: #{verbose_forward.1} parent=1 // pred_fallthru
      _
    // Predicated region
    $region10: #{verbose_forward.1} parent=1 // pred_check
      _
    $region11: #{verbose_forward.1} parent=1 // pred_check_branch
      %18 = sbr.rel (0) target = $region13
    $region12: #{verbose_forward.1} parent=1 // pred_region
      _
    $region13: #{verbose_forward.1} parent=1 // pred_fallthru
      _
    // Predicated region
    $region14: #{verbose_forward.1} parent=1 // pred_check
      _
    $region15: #{verbose_forward.1} parent=1 // pred_check_branch
      %20 = sbr.rel (0) target = $region17
    $region16: #{verbose_forward.1} parent=1 // pred_region
      _
    $region17: #{verbose_forward.1} parent=1 // pred_fallthru
      _
    // Predicated region
    $region18: #{verbose_forward.1} parent=1 // pred_check
      _
    $region19: #{verbose_forward.1} parent=1 // pred_check_branch
      %22 = sbr.rel (0) target = $region21
    $region20: #{verbose_forward.1} parent=1 // pred_region
      _
    $region21: #{verbose_forward.1} parent=1 // pred_fallthru
      _
    // Predicated region
    $region22: #{verbose_forward.1} parent=1 // pred_check
      _
    $region23: #{verbose_forward.1} parent=1 // pred_check_branch
      %24 = sbr.rel (0) target = $region25
    $region24: #{verbose_forward.1} parent=1 // pred_region
      _
    $region25: #{verbose_forward.1} parent=1 // pred_fallthru
      _
    // Predicated region
    $region26: #{verbose_forward.1} parent=1 // pred_check
      _
    $region27: #{verbose_forward.1} parent=1 // pred_check_branch
      %26 = sbr.rel (0) target = $region29
    $region28: #{verbose_forward.1} parent=1 // pred_region
      _
    $region29: #{verbose_forward.1} parent=1 // pred_fallthru
      _
    %v28 = vld [vmem:[%s1] sm:$0xf]
    %v29 = vld [vmem:[%s0] sm:$0xff]
    %v30 = vld [vmem:[%s0 + $0x8] sm:$0xff]
    %v31 = vld [vmem:[%s0 + $0x10] sm:$0xff]
    %v32 = vld [vmem:[%s0 + $0x18] sm:$0xff]
    %v33 = vld [vmem:[%s0 + $0x20] sm:$0xff]
    %v34 = vld [vmem:[%s0 + $0x28] sm:$0xff]
    %v35 = vld [vmem:[%s0 + $0x30] sm:$0xff]
    %v36 = vld [vmem:[%s0 + $0x38] sm:$0xff]
    %v37 = vld [vmem:[%s0 + $0x40] sm:$0xff]
    %v38 = vld [vmem:[%s0 + $0x48] sm:$0xff]
    %v39 = vld [vmem:[%s0 + $0x50] sm:$0xff]
    %v40 = vld [vmem:[%s0 + $0x58] sm:$0xff]
    %v41 = vld [vmem:[%s0 + $0x60] sm:$0xff]
    %v42 = vld [vmem:[%s0 + $0x68] sm:$0xff]
    %v43 = vld [vmem:[%s0 + $0x70] sm:$0xff]
    %v44 = vld [vmem:[%s0 + $0x78] sm:$0xff]
    %v45 = vld [vmem:[%s0 + $0x80] sm:$0xff]
    %v46 = vld [vmem:[%s0 + $0x88] sm:$0xff]
    %v47 = vld [vmem:[%s0 + $0x90] sm:$0xff]
    %v48 = vld [vmem:[%s0 + $0x98] sm:$0xff]
    %v49 = vld [vmem:[%s0 + $0xa0] sm:$0xff]
    %v50 = vld [vmem:[%s0 + $0xa8] sm:$0xff]
    %v51 = vld [vmem:[%s0 + $0xb0] sm:$0xff]
    %v52 = vld [vmem:[%s0 + $0xb8] sm:$0xff]
    %v53 = vld [vmem:[%s0 + $0xc0] sm:$0xff]
    %v54 = vld [vmem:[%s0 + $0xc8] sm:$0xff]
    %v55 = vld [vmem:[%s0 + $0xd0] sm:$0xff]
    %v56 = vld [vmem:[%s0 + $0xd8] sm:$0xff]
    %v57 = vld [vmem:[%s0 + $0xe0] sm:$0xff]
    %v58 = vld [vmem:[%s0 + $0xe8] sm:$0xff]
    %v59 = vld [vmem:[%s0 + $0xf0] sm:$0xff]
    %v60 = vld [vmem:[%s0 + $0xf8] sm:$0xff]
    %v61 = vld [vmem:[%s2] sm:$0xff]
    %63 = vset.pattern.permute.xlu0 0
    %64 = vperm.xlu0 %63, %v61
    %v65 = vpop.permute.xlu0 %64
    %v99 = vunpack.c.l.b16 %v29
    %v100 = vunpack.c.h.b16 %v29
    %v101 = vunpack.c.l.b16 %v30
    %v102 = vunpack.c.h.b16 %v30
    %v103 = vunpack.c.l.b16 %v31
    %v104 = vunpack.c.h.b16 %v31
    %v105 = vunpack.c.l.b16 %v32
    %v106 = vunpack.c.h.b16 %v32
    %v107 = vunpack.c.l.b16 %v33
    %v108 = vunpack.c.h.b16 %v33
    %v109 = vunpack.c.l.b16 %v34
    %v110 = vunpack.c.h.b16 %v34
    %v111 = vunpack.c.l.b16 %v35
    %v112 = vunpack.c.h.b16 %v35
    %v113 = vunpack.c.l.b16 %v36
    %v114 = vunpack.c.h.b16 %v36
    %v115 = vunpack.c.l.b16 %v37
    %v116 = vunpack.c.h.b16 %v37
    %v117 = vunpack.c.l.b16 %v38
    %v118 = vunpack.c.h.b16 %v38
    %v119 = vunpack.c.l.b16 %v39
    %v120 = vunpack.c.h.b16 %v39
    %v121 = vunpack.c.l.b16 %v40
    %v122 = vunpack.c.h.b16 %v40
    %v123 = vunpack.c.l.b16 %v41
    %v124 = vunpack.c.h.b16 %v41
    %v125 = vunpack.c.l.b16 %v42
    %v126 = vunpack.c.h.b16 %v42
    %v127 = vunpack.c.l.b16 %v43
    %v128 = vunpack.c.h.b16 %v43
    %v129 = vunpack.c.l.b16 %v44
    %v130 = vunpack.c.h.b16 %v44
    %v131 = vunpack.c.l.b16 %v45
    %v132 = vunpack.c.h.b16 %v45
    %v133 = vunpack.c.l.b16 %v46
    %v134 = vunpack.c.h.b16 %v46
    %v135 = vunpack.c.l.b16 %v47
    %v136 = vunpack.c.h.b16 %v47
    %v137 = vunpack.c.l.b16 %v48
    %v138 = vunpack.c.h.b16 %v48
    %v139 = vunpack.c.l.b16 %v49
    %v140 = vunpack.c.h.b16 %v49
    %v141 = vunpack.c.l.b16 %v50
    %v142 = vunpack.c.h.b16 %v50
    %v143 = vunpack.c.l.b16 %v51
    %v144 = vunpack.c.h.b16 %v51
    %v145 = vunpack.c.l.b16 %v52
    %v146 = vunpack.c.h.b16 %v52
    %v147 = vunpack.c.l.b16 %v53
    %v148 = vunpack.c.h.b16 %v53
    %v149 = vunpack.c.l.b16 %v54
    %v150 = vunpack.c.h.b16 %v54
    %v151 = vunpack.c.l.b16 %v55
    %v152 = vunpack.c.h.b16 %v55
    %v153 = vunpack.c.l.b16 %v56
    %v154 = vunpack.c.h.b16 %v56
    %v155 = vunpack.c.l.b16 %v57
    %v156 = vunpack.c.h.b16 %v57
    %v157 = vunpack.c.l.b16 %v58
    %v158 = vunpack.c.h.b16 %v58
    %v159 = vunpack.c.l.b16 %v59
    %v160 = vunpack.c.h.b16 %v59
    %v161 = vunpack.c.l.b16 %v60
    %v162 = vunpack.c.h.b16 %v60
    %v163 = vpack.c.b16 %v103, %v99
    %v164 = vpack.c.b16 %v104, %v100
    %v165 = vpack.c.b16 %v105, %v101
    %v166 = vpack.c.b16 %v106, %v102
    %v167 = vpack.c.b16 %v111, %v107
    %v168 = vpack.c.b16 %v112, %v108
    %v169 = vpack.c.b16 %v113, %v109
    %v170 = vpack.c.b16 %v114, %v110
    %v171 = vpack.c.b16 %v119, %v115
    %v172 = vpack.c.b16 %v120, %v116
    %v173 = vpack.c.b16 %v121, %v117
    %v174 = vpack.c.b16 %v122, %v118
    %v175 = vpack.c.b16 %v127, %v123
    %v176 = vpack.c.b16 %v128, %v124
    %v177 = vpack.c.b16 %v129, %v125
    %v178 = vpack.c.b16 %v130, %v126
    %v179 = vpack.c.b16 %v135, %v131
    %v180 = vpack.c.b16 %v136, %v132
    %v181 = vpack.c.b16 %v137, %v133
    %v182 = vpack.c.b16 %v138, %v134
    %v183 = vpack.c.b16 %v143, %v139
    %v184 = vpack.c.b16 %v144, %v140
    %v185 = vpack.c.b16 %v145, %v141
    %v186 = vpack.c.b16 %v146, %v142
    %v187 = vpack.c.b16 %v151, %v147
    %v188 = vpack.c.b16 %v152, %v148
    %v189 = vpack.c.b16 %v153, %v149
    %v190 = vpack.c.b16 %v154, %v150
    %v191 = vpack.c.b16 %v159, %v155
    %v192 = vpack.c.b16 %v160, %v156
    %v193 = vpack.c.b16 %v161, %v157
    %v194 = vpack.c.b16 %v162, %v158
    %227 = vmatprep.subr.bf16.mxu0 %v164
    %228 = vmatpush1.bf16.msra.mxu0 %v163
    %229 = vmatprep.subr.bf16.mxu0 %v168
    %230 = vmatpush1.bf16.msra.mxu0 %v167
    %231 = vmatprep.subr.bf16.mxu0 %v172
    %232 = vmatpush1.bf16.msra.mxu0 %v171
    %233 = vmatprep.subr.bf16.mxu0 %v176
    %234 = vmatpush1.bf16.msra.mxu0 %v175
    %235 = vmatprep.subr.bf16.mxu0 %v180
    %236 = vmatpush1.bf16.msra.mxu0 %v179
    %237 = vmatprep.subr.bf16.mxu0 %v184
    %238 = vmatpush1.bf16.msra.mxu0 %v183
    %239 = vmatprep.subr.bf16.mxu0 %v188
    %240 = vmatpush1.bf16.msra.mxu0 %v187
    %241 = vmatprep.subr.bf16.mxu0 %v192
    %242 = vmatpush1.bf16.msra.mxu0 %v191
    %243 = vmatprep.subr.bf16.mxu0 0
    %244 = vmatpush1.bf16.msra.mxu0 0
    %245 = vmatprep.subr.bf16.mxu0 0
    %246 = vmatpush1.bf16.msra.mxu0 0
    %247 = vmatprep.subr.bf16.mxu0 0
    %248 = vmatpush1.bf16.msra.mxu0 0
    %249 = vmatprep.subr.bf16.mxu0 0
    %250 = vmatpush1.bf16.msra.mxu0 0
    %251 = vmatprep.subr.bf16.mxu0 0
    %252 = vmatpush1.bf16.msra.mxu0 0
    %253 = vmatprep.subr.bf16.mxu0 0
    %254 = vmatpush1.bf16.msra.mxu0 0
    %255 = vmatprep.subr.bf16.mxu0 0
    %256 = vmatpush1.bf16.msra.mxu0 0
    %257 = vmatprep.subr.bf16.mxu0 0
    %258 = vmatpush1.bf16.msra.mxu0 0
    %259 = vmatprep.mubr.bf16.mxu0 0
    %260 = vmatmul.mubr.bf16.gmra.mrb[0].mxu0 %v28
    %v261 = vpop.f32.mrb[0].mxu0
    %v262 = vadd.f32 %v65, %v261
    %v263 = vpop.f32.mrb[0].mxu0
    %v264 = vadd.f32 %v65, %v263
    %v265 = vpop.f32.mrb[0].mxu0
    %v266 = vpop.f32.mrb[0].mxu0
    %267 = vdwg.mxu0
    %268 = vmatprep.subr.bf16.mxu0 %v166
    %269 = vmatpush1.bf16.msra.mxu0 %v165
    %270 = vmatprep.subr.bf16.mxu0 %v170
    %271 = vmatpush1.bf16.msra.mxu0 %v169
    %272 = vmatprep.subr.bf16.mxu0 %v174
    %273 = vmatpush1.bf16.msra.mxu0 %v173
    %274 = vmatprep.subr.bf16.mxu0 %v178
    %275 = vmatpush1.bf16.msra.mxu0 %v177
    %276 = vmatprep.subr.bf16.mxu0 %v182
    %277 = vmatpush1.bf16.msra.mxu0 %v181
    %278 = vmatprep.subr.bf16.mxu0 %v186
    %279 = vmatpush1.bf16.msra.mxu0 %v185
    %280 = vmatprep.subr.bf16.mxu0 %v190
    %281 = vmatpush1.bf16.msra.mxu0 %v189
    %282 = vmatprep.subr.bf16.mxu0 %v194
    %283 = vmatpush1.bf16.msra.mxu0 %v193
    %284 = vmatprep.subr.bf16.mxu0 0
    %285 = vmatpush1.bf16.msra.mxu0 0
    %286 = vmatprep.subr.bf16.mxu0 0
    %287 = vmatpush1.bf16.msra.mxu0 0
    %288 = vmatprep.subr.bf16.mxu0 0
    %289 = vmatpush1.bf16.msra.mxu0 0
    %290 = vmatprep.subr.bf16.mxu0 0
    %291 = vmatpush1.bf16.msra.mxu0 0
    %292 = vmatprep.subr.bf16.mxu0 0
    %293 = vmatpush1.bf16.msra.mxu0 0
    %294 = vmatprep.subr.bf16.mxu0 0
    %295 = vmatpush1.bf16.msra.mxu0 0
    %296 = vmatprep.subr.bf16.mxu0 0
    %297 = vmatpush1.bf16.msra.mxu0 0
    %298 = vmatprep.subr.bf16.mxu0 0
    %299 = vmatpush1.bf16.msra.mxu0 0
    %300 = vmatprep.mubr.bf16.mxu0 0
    %301 = vmatmul.mubr.bf16.gmra.mrb[0].mxu0 %v28
    %v302 = vpop.f32.mrb[0].mxu0
    %v303 = vadd.f32 %v65, %v302
    %v304 = vpop.f32.mrb[0].mxu0
    %v305 = vadd.f32 %v65, %v304
    %v306 = vpop.f32.mrb[0].mxu0
    %v307 = vpop.f32.mrb[0].mxu0
    %308 = vdwg.mxu0
    %v309 = vmax.f32 %v262, 0.0
    %v310 = vmax.f32 %v264, 0.0
    %v311 = vmax.f32 %v303, 0.0
    %v312 = vmax.f32 %v305, 0.0
    %v315 = vcombine.low %v309, %v310
    %v317 = vunpack.c.l.s4 1966171168
    %v318 = vunpack.c.0.s8 %v317
    %v319 = vlaneseq
    %v320 = vshrl.u32 %v319, 7
    %v321 = vsub.s32 %v318, %v320
    %v322 = vrot.slane %v315, %v321
    %v324 = vunpack.c.l.s4 1966171168
    %v325 = vunpack.c.0.s8 %v324
    %v326 = vlaneseq
    %v327 = vshrl.u32 %v326, 7
    %v328 = vsub.s32 %v325, %v327
    %v329 = vrot.slane %v322, %v328
    %v331 = vlaneseq
    %vm332 = vcmp.ge.s32.totalorder %v331, 0
    %vm333 = vcmp.lt.s32.totalorder %v331, 256
    %vm334 = vmand %vm332, %vm333
    %335 = vst.msk [vmem:[#allocation2] ss:$2 sm:$0x3] %vm334, %v329
    %v336 = vcombine.high %v322, %v322
    %v338 = vunpack.c.l.s4 1966171168
    %v339 = vunpack.c.0.s8 %v338
    %v340 = vlaneseq
    %v341 = vshrl.u32 %v340, 7
    %v342 = vsub.s32 %v339, %v341
    %v343 = vrot.slane %v336, %v342
    %s345 = scalar_lea.vmem [#allocation2], 4
    %346 = vst.msk [vmem:[%s345] ss:$2 sm:$0x3] %vm334, %v343
    %v347 = vcombine.high %v329, %v329
    %s349 = scalar_lea.vmem [#allocation2], 8
    %350 = vst.msk [vmem:[%s349] ss:$2 sm:$0x3] %vm334, %v347
    %v351 = vcombine.high %v343, %v343
    %s353 = scalar_lea.vmem [#allocation2], 12
    %354 = vst.msk [vmem:[%s353] ss:$2 sm:$0x3] %vm334, %v351
    %v355 = vcombine.high %v309, %v310
    %v357 = vunpack.c.l.s4 1966171168
    %v358 = vunpack.c.0.s8 %v357
    %v359 = vlaneseq
    %v360 = vshrl.u32 %v359, 7
    %v361 = vsub.s32 %v358, %v360
    %v362 = vrot.slane %v355, %v361
    %v364 = vunpack.c.l.s4 1966171168
    %v365 = vunpack.c.0.s8 %v364
    %v366 = vlaneseq
    %v367 = vshrl.u32 %v366, 7
    %v368 = vsub.s32 %v365, %v367
    %v369 = vrot.slane %v362, %v368
    %s371 = scalar_lea.vmem [#allocation2], 16
    %372 = vst.msk [vmem:[%s371] ss:$2 sm:$0x3] %vm334, %v369
    %v373 = vcombine.high %v362, %v362
    %v375 = vunpack.c.l.s4 1966171168
    %v376 = vunpack.c.0.s8 %v375
    %v377 = vlaneseq
    %v378 = vshrl.u32 %v377, 7
    %v379 = vsub.s32 %v376, %v378
    %v380 = vrot.slane %v373, %v379
    %s382 = scalar_lea.vmem [#allocation2], 20
    %383 = vst.msk [vmem:[%s382] ss:$2 sm:$0x3] %vm334, %v380
    %v384 = vcombine.high %v369, %v369
    %s386 = scalar_lea.vmem [#allocation2], 24
    %387 = vst.msk [vmem:[%s386] ss:$2 sm:$0x3] %vm334, %v384
    %v388 = vcombine.high %v380, %v380
    %s390 = scalar_lea.vmem [#allocation2], 28
    %391 = vst.msk [vmem:[%s390] ss:$2 sm:$0x3] %vm334, %v388
    %v394 = vcombine.low %v311, %v312
    %v396 = vunpack.c.l.s4 1966171168
    %v397 = vunpack.c.0.s8 %v396
    %v398 = vlaneseq
    %v399 = vshrl.u32 %v398, 7
    %v400 = vsub.s32 %v397, %v399
    %v401 = vrot.slane %v394, %v400
    %v403 = vunpack.c.l.s4 1966171168
    %v404 = vunpack.c.0.s8 %v403
    %v405 = vlaneseq
    %v406 = vshrl.u32 %v405, 7
    %v407 = vsub.s32 %v404, %v406
    %v408 = vrot.slane %v401, %v407
    %s410 = scalar_lea.vmem [#allocation2], 1
    %411 = vst.msk [vmem:[%s410] ss:$2 sm:$0x3] %vm334, %v408
    %v412 = vcombine.high %v401, %v401
    %v414 = vunpack.c.l.s4 1966171168
    %v415 = vunpack.c.0.s8 %v414
    %v416 = vlaneseq
    %v417 = vshrl.u32 %v416, 7
    %v418 = vsub.s32 %v415, %v417
    %v419 = vrot.slane %v412, %v418
    %s421 = scalar_lea.vmem [#allocation2], 5
    %422 = vst.msk [vmem:[%s421] ss:$2 sm:$0x3] %vm334, %v419
    %v423 = vcombine.high %v408, %v408
    %s425 = scalar_lea.vmem [#allocation2], 9
    %426 = vst.msk [vmem:[%s425] ss:$2 sm:$0x3] %vm334, %v423
    %v427 = vcombine.high %v419, %v419
    %s429 = scalar_lea.vmem [#allocation2], 13
    %430 = vst.msk [vmem:[%s429] ss:$2 sm:$0x3] %vm334, %v427
    %v431 = vcombine.high %v311, %v312
    %v433 = vunpack.c.l.s4 1966171168
    %v434 = vunpack.c.0.s8 %v433
    %v435 = vlaneseq
    %v436 = vshrl.u32 %v435, 7
    %v437 = vsub.s32 %v434, %v436
    %v438 = vrot.slane %v431, %v437
    %v440 = vunpack.c.l.s4 1966171168
    %v441 = vunpack.c.0.s8 %v440
    %v442 = vlaneseq
    %v443 = vshrl.u32 %v442, 7
    %v444 = vsub.s32 %v441, %v443
    %v445 = vrot.slane %v438, %v444
    %s447 = scalar_lea.vmem [#allocation2], 17
    %448 = vst.msk [vmem:[%s447] ss:$2 sm:$0x3] %vm334, %v445
    %v449 = vcombine.high %v438, %v438
    %v451 = vunpack.c.l.s4 1966171168
    %v452 = vunpack.c.0.s8 %v451
    %v453 = vlaneseq
    %v454 = vshrl.u32 %v453, 7
    %v455 = vsub.s32 %v452, %v454
    %v456 = vrot.slane %v449, %v455
    %s458 = scalar_lea.vmem [#allocation2], 21
    %459 = vst.msk [vmem:[%s458] ss:$2 sm:$0x3] %vm334, %v456
    %v460 = vcombine.high %v445, %v445
    %s462 = scalar_lea.vmem [#allocation2], 25
    %463 = vst.msk [vmem:[%s462] ss:$2 sm:$0x3] %vm334, %v460
    %v464 = vcombine.high %v456, %v456
    %s466 = scalar_lea.vmem [#allocation2], 29
    %467 = vst.msk [vmem:[%s466] ss:$2 sm:$0x3] %vm334, %v464
    %v468 = vld [vmem:[#allocation2] sm:$0xff]
    %v469 = vld [vmem:[#allocation2 + $0x8] sm:$0xff]
    %v470 = vld [vmem:[#allocation2 + $0x10] sm:$0xff]
    %v471 = vld [vmem:[#allocation2 + $0x18] sm:$0xff]
    %v476 = vcombine.high %v468, %v468
    %v478 = vunpack.c.l.s4 1983009808
    %v479 = vunpack.c.0.s8 %v478
    %v480 = vlaneseq
    %v481 = vshrl.u32 %v480, 7
    %v482 = vsub.s32 %v479, %v481
    %v483 = vrot.slane %v468, %v482
    %v485 = vunpack.c.l.s4 1983009808
    %v486 = vunpack.c.0.s8 %v485
    %v487 = vlaneseq
    %v488 = vshrl.u32 %v487, 7
    %v489 = vsub.s32 %v486, %v488
    %v490 = vrot.slane %v476, %v489
    %v491 = vcombine.high %v483, %v483
    %v492 = vcombine.high %v490, %v490
    %v493 = vcombine.high %v469, %v469
    %v495 = vunpack.c.l.s4 1983009808
    %v496 = vunpack.c.0.s8 %v495
    %v497 = vlaneseq
    %v498 = vshrl.u32 %v497, 7
    %v499 = vsub.s32 %v496, %v498
    %v500 = vrot.slane %v469, %v499
    %v502 = vunpack.c.l.s4 1983009808
    %v503 = vunpack.c.0.s8 %v502
    %v504 = vlaneseq
    %v505 = vshrl.u32 %v504, 7
    %v506 = vsub.s32 %v503, %v505
    %v507 = vrot.slane %v493, %v506
    %v508 = vcombine.high %v500, %v500
    %v509 = vcombine.high %v507, %v507
    %v510 = vcombine.high %v470, %v470
    %v512 = vunpack.c.l.s4 1983009808
    %v513 = vunpack.c.0.s8 %v512
    %v514 = vlaneseq
    %v515 = vshrl.u32 %v514, 7
    %v516 = vsub.s32 %v513, %v515
    %v517 = vrot.slane %v470, %v516
    %v519 = vunpack.c.l.s4 1983009808
    %v520 = vunpack.c.0.s8 %v519
    %v521 = vlaneseq
    %v522 = vshrl.u32 %v521, 7
    %v523 = vsub.s32 %v520, %v522
    %v524 = vrot.slane %v510, %v523
    %v525 = vcombine.high %v517, %v517
    %v526 = vcombine.high %v524, %v524
    %v527 = vcombine.high %v471, %v471
    %v529 = vunpack.c.l.s4 1983009808
    %v530 = vunpack.c.0.s8 %v529
    %v531 = vlaneseq
    %v532 = vshrl.u32 %v531, 7
    %v533 = vsub.s32 %v530, %v532
    %v534 = vrot.slane %v471, %v533
    %v536 = vunpack.c.l.s4 1983009808
    %v537 = vunpack.c.0.s8 %v536
    %v538 = vlaneseq
    %v539 = vshrl.u32 %v538, 7
    %v540 = vsub.s32 %v537, %v539
    %v541 = vrot.slane %v527, %v540
    %v542 = vcombine.high %v534, %v534
    %v543 = vcombine.high %v541, %v541
    %v560 = vpack.c.bf16 %v483, %v483
    %v561 = vpack.c.bf16 %v491, %v491
    %v562 = vpack.c.bf16 %v490, %v490
    %v563 = vpack.c.bf16 %v492, %v492
    %v564 = vpack.c.bf16 %v500, %v500
    %v565 = vpack.c.bf16 %v508, %v508
    %v566 = vpack.c.bf16 %v507, %v507
    %v567 = vpack.c.bf16 %v509, %v509
    %v568 = vpack.c.bf16 %v517, %v517
    %v569 = vpack.c.bf16 %v525, %v525
    %v570 = vpack.c.bf16 %v524, %v524
    %v571 = vpack.c.bf16 %v526, %v526
    %v572 = vpack.c.bf16 %v534, %v534
    %v573 = vpack.c.bf16 %v542, %v542
    %v574 = vpack.c.bf16 %v541, %v541
    %v575 = vpack.c.bf16 %v543, %v543
    %v576 = vld [vmem:[%s3] sm:$0xf]
    %v577 = vld [vmem:[%s3 + $0x4] sm:$0xf]
    %v578 = vld [vmem:[%s3 + $0x8] sm:$0xf]
    %v579 = vld [vmem:[%s3 + $0xc] sm:$0xf]
    %v580 = vld [vmem:[%s3 + $0x10] sm:$0xf]
    %v581 = vld [vmem:[%s3 + $0x14] sm:$0xf]
    %v582 = vld [vmem:[%s3 + $0x18] sm:$0xf]
    %v583 = vld [vmem:[%s3 + $0x1c] sm:$0xf]
    %v584 = vld [vmem:[%s3 + $0x20] sm:$0xf]
    %v585 = vld [vmem:[%s3 + $0x24] sm:$0xf]
    %v586 = vld [vmem:[%s3 + $0x28] sm:$0xf]
    %v587 = vld [vmem:[%s3 + $0x2c] sm:$0xf]
    %v588 = vld [vmem:[%s3 + $0x30] sm:$0xf]
    %v589 = vld [vmem:[%s3 + $0x34] sm:$0xf]
    %v590 = vld [vmem:[%s3 + $0x38] sm:$0xf]
    %v591 = vld [vmem:[%s3 + $0x3c] sm:$0xf]
    %v592 = vld [vmem:[%s3 + $0x40] sm:$0xf]
    %v593 = vld [vmem:[%s3 + $0x44] sm:$0xf]
    %v594 = vld [vmem:[%s3 + $0x48] sm:$0xf]
    %v595 = vld [vmem:[%s3 + $0x4c] sm:$0xf]
    %v596 = vld [vmem:[%s3 + $0x50] sm:$0xf]
    %v597 = vld [vmem:[%s3 + $0x54] sm:$0xf]
    %v598 = vld [vmem:[%s3 + $0x58] sm:$0xf]
    %v599 = vld [vmem:[%s3 + $0x5c] sm:$0xf]
    %v600 = vld [vmem:[%s3 + $0x60] sm:$0xf]
    %v601 = vld [vmem:[%s3 + $0x64] sm:$0xf]
    %v602 = vld [vmem:[%s3 + $0x68] sm:$0xf]
    %v603 = vld [vmem:[%s3 + $0x6c] sm:$0xf]
    %v604 = vld [vmem:[%s3 + $0x70] sm:$0xf]
    %v605 = vld [vmem:[%s3 + $0x74] sm:$0xf]
    %v606 = vld [vmem:[%s3 + $0x78] sm:$0xf]
    %v607 = vld [vmem:[%s3 + $0x7c] sm:$0xf]
    %v608 = vld [vmem:[%s3 + $0x80] sm:$0xf]
    %v609 = vld [vmem:[%s3 + $0x84] sm:$0xf]
    %v610 = vld [vmem:[%s3 + $0x88] sm:$0xf]
    %v611 = vld [vmem:[%s3 + $0x8c] sm:$0xf]
    %v612 = vld [vmem:[%s3 + $0x90] sm:$0xf]
    %v613 = vld [vmem:[%s3 + $0x94] sm:$0xf]
    %v614 = vld [vmem:[%s3 + $0x98] sm:$0xf]
    %v615 = vld [vmem:[%s3 + $0x9c] sm:$0xf]
    %v616 = vld [vmem:[%s3 + $0xa0] sm:$0xf]
    %v617 = vld [vmem:[%s3 + $0xa4] sm:$0xf]
    %v618 = vld [vmem:[%s3 + $0xa8] sm:$0xf]
    %v619 = vld [vmem:[%s3 + $0xac] sm:$0xf]
    %v620 = vld [vmem:[%s3 + $0xb0] sm:$0xf]
    %v621 = vld [vmem:[%s3 + $0xb4] sm:$0xf]
    %v622 = vld [vmem:[%s3 + $0xb8] sm:$0xf]
    %v623 = vld [vmem:[%s3 + $0xbc] sm:$0xf]
    %v624 = vld [vmem:[%s3 + $0xc0] sm:$0xf]
    %v625 = vld [vmem:[%s3 + $0xc4] sm:$0xf]
    %v626 = vld [vmem:[%s3 + $0xc8] sm:$0xf]
    %v627 = vld [vmem:[%s3 + $0xcc] sm:$0xf]
    %v628 = vld [vmem:[%s3 + $0xd0] sm:$0xf]
    %v629 = vld [vmem:[%s3 + $0xd4] sm:$0xf]
    %v630 = vld [vmem:[%s3 + $0xd8] sm:$0xf]
    %v631 = vld [vmem:[%s3 + $0xdc] sm:$0xf]
    %v632 = vld [vmem:[%s3 + $0xe0] sm:$0xf]
    %v633 = vld [vmem:[%s3 + $0xe4] sm:$0xf]
    %v634 = vld [vmem:[%s3 + $0xe8] sm:$0xf]
    %v635 = vld [vmem:[%s3 + $0xec] sm:$0xf]
    %v636 = vld [vmem:[%s3 + $0xf0] sm:$0xf]
    %v637 = vld [vmem:[%s3 + $0xf4] sm:$0xf]
    %v638 = vld [vmem:[%s3 + $0xf8] sm:$0xf]
    %v639 = vld [vmem:[%s3 + $0xfc] sm:$0xf]
    %v640 = vld [vmem:[%s3 + $0x100] sm:$0xf]
    %v641 = vld [vmem:[%s3 + $0x104] sm:$0xf]
    %v642 = vld [vmem:[%s3 + $0x108] sm:$0xf]
    %v643 = vld [vmem:[%s3 + $0x10c] sm:$0xf]
    %v644 = vld [vmem:[%s3 + $0x110] sm:$0xf]
    %v645 = vld [vmem:[%s3 + $0x114] sm:$0xf]
    %v646 = vld [vmem:[%s3 + $0x118] sm:$0xf]
    %v647 = vld [vmem:[%s3 + $0x11c] sm:$0xf]
    %v648 = vld [vmem:[%s3 + $0x120] sm:$0xf]
    %v649 = vld [vmem:[%s3 + $0x124] sm:$0xf]
    %v650 = vld [vmem:[%s3 + $0x128] sm:$0xf]
    %v651 = vld [vmem:[%s3 + $0x12c] sm:$0xf]
    %v652 = vld [vmem:[%s3 + $0x130] sm:$0xf]
    %v653 = vld [vmem:[%s3 + $0x134] sm:$0xf]
    %v654 = vld [vmem:[%s3 + $0x138] sm:$0xf]
    %v655 = vld [vmem:[%s3 + $0x13c] sm:$0xf]
    %v656 = vld [vmem:[%s3 + $0x140] sm:$0xf]
    %v657 = vld [vmem:[%s3 + $0x144] sm:$0xf]
    %v658 = vld [vmem:[%s3 + $0x148] sm:$0xf]
    %v659 = vld [vmem:[%s3 + $0x14c] sm:$0xf]
    %v660 = vld [vmem:[%s3 + $0x150] sm:$0xf]
    %v661 = vld [vmem:[%s3 + $0x154] sm:$0xf]
    %v662 = vld [vmem:[%s3 + $0x158] sm:$0xf]
    %v663 = vld [vmem:[%s3 + $0x15c] sm:$0xf]
    %v664 = vld [vmem:[%s3 + $0x160] sm:$0xf]
    %v665 = vld [vmem:[%s3 + $0x164] sm:$0xf]
    %v666 = vld [vmem:[%s3 + $0x168] sm:$0xf]
    %v667 = vld [vmem:[%s3 + $0x16c] sm:$0xf]
    %v668 = vld [vmem:[%s3 + $0x170] sm:$0xf]
    %v669 = vld [vmem:[%s3 + $0x174] sm:$0xf]
    %v670 = vld [vmem:[%s3 + $0x178] sm:$0xf]
    %v671 = vld [vmem:[%s3 + $0x17c] sm:$0xf]
    %v672 = vld [vmem:[%s3 + $0x180] sm:$0xf]
    %v673 = vld [vmem:[%s3 + $0x184] sm:$0xf]
    %v674 = vld [vmem:[%s3 + $0x188] sm:$0xf]
    %v675 = vld [vmem:[%s3 + $0x18c] sm:$0xf]
    %v676 = vld [vmem:[%s3 + $0x190] sm:$0xf]
    %v677 = vld [vmem:[%s3 + $0x194] sm:$0xf]
    %v678 = vld [vmem:[%s3 + $0x198] sm:$0xf]
    %v679 = vld [vmem:[%s3 + $0x19c] sm:$0xf]
    %v680 = vld [vmem:[%s3 + $0x1a0] sm:$0xf]
    %v681 = vld [vmem:[%s3 + $0x1a4] sm:$0xf]
    %v682 = vld [vmem:[%s3 + $0x1a8] sm:$0xf]
    %v683 = vld [vmem:[%s3 + $0x1ac] sm:$0xf]
    %v684 = vld [vmem:[%s3 + $0x1b0] sm:$0xf]
    %v685 = vld [vmem:[%s3 + $0x1b4] sm:$0xf]
    %v686 = vld [vmem:[%s3 + $0x1b8] sm:$0xf]
    %v687 = vld [vmem:[%s3 + $0x1bc] sm:$0xf]
    %v688 = vld [vmem:[%s3 + $0x1c0] sm:$0xf]
    %v689 = vld [vmem:[%s3 + $0x1c4] sm:$0xf]
    %v690 = vld [vmem:[%s3 + $0x1c8] sm:$0xf]
    %v691 = vld [vmem:[%s3 + $0x1cc] sm:$0xf]
    %v692 = vld [vmem:[%s3 + $0x1d0] sm:$0xf]
    %v693 = vld [vmem:[%s3 + $0x1d4] sm:$0xf]
    %v694 = vld [vmem:[%s3 + $0x1d8] sm:$0xf]
    %v695 = vld [vmem:[%s3 + $0x1dc] sm:$0xf]
    %v696 = vld [vmem:[%s3 + $0x1e0] sm:$0xf]
    %v697 = vld [vmem:[%s3 + $0x1e4] sm:$0xf]
    %v698 = vld [vmem:[%s3 + $0x1e8] sm:$0xf]
    %v699 = vld [vmem:[%s3 + $0x1ec] sm:$0xf]
    %v700 = vld [vmem:[%s3 + $0x1f0] sm:$0xf]
    %v701 = vld [vmem:[%s3 + $0x1f4] sm:$0xf]
    %v702 = vld [vmem:[%s3 + $0x1f8] sm:$0xf]
    %v703 = vld [vmem:[%s3 + $0x1fc] sm:$0xf]
    %v704 = vld [vmem:[%s3 + $0x200] sm:$0xf]
    %v705 = vld [vmem:[%s3 + $0x204] sm:$0xf]
    %v706 = vld [vmem:[%s3 + $0x208] sm:$0xf]
    %v707 = vld [vmem:[%s3 + $0x20c] sm:$0xf]
    %v708 = vld [vmem:[%s3 + $0x210] sm:$0xf]
    %v709 = vld [vmem:[%s3 + $0x214] sm:$0xf]
    %v710 = vld [vmem:[%s3 + $0x218] sm:$0xf]
    %v711 = vld [vmem:[%s3 + $0x21c] sm:$0xf]
    %v712 = vld [vmem:[%s3 + $0x220] sm:$0xf]
    %v713 = vld [vmem:[%s3 + $0x224] sm:$0xf]
    %v714 = vld [vmem:[%s3 + $0x228] sm:$0xf]
    %v715 = vld [vmem:[%s3 + $0x22c] sm:$0xf]
    %v716 = vld [vmem:[%s3 + $0x230] sm:$0xf]
    %v717 = vld [vmem:[%s3 + $0x234] sm:$0xf]
    %v718 = vld [vmem:[%s3 + $0x238] sm:$0xf]
    %v719 = vld [vmem:[%s3 + $0x23c] sm:$0xf]
    %v720 = vld [vmem:[%s3 + $0x240] sm:$0xf]
    %v721 = vld [vmem:[%s3 + $0x244] sm:$0xf]
    %v722 = vld [vmem:[%s3 + $0x248] sm:$0xf]
    %v723 = vld [vmem:[%s3 + $0x24c] sm:$0xf]
    %v724 = vld [vmem:[%s3 + $0x250] sm:$0xf]
    %v725 = vld [vmem:[%s3 + $0x254] sm:$0xf]
    %v726 = vld [vmem:[%s3 + $0x258] sm:$0xf]
    %v727 = vld [vmem:[%s3 + $0x25c] sm:$0xf]
    %v728 = vld [vmem:[%s3 + $0x260] sm:$0xf]
    %v729 = vld [vmem:[%s3 + $0x264] sm:$0xf]
    %v730 = vld [vmem:[%s3 + $0x268] sm:$0xf]
    %v731 = vld [vmem:[%s3 + $0x26c] sm:$0xf]
    %v732 = vld [vmem:[%s3 + $0x270] sm:$0xf]
    %v733 = vld [vmem:[%s3 + $0x274] sm:$0xf]
    %v734 = vld [vmem:[%s3 + $0x278] sm:$0xf]
    %v735 = vld [vmem:[%s3 + $0x27c] sm:$0xf]
    %v736 = vld [vmem:[%s3 + $0x280] sm:$0xf]
    %v737 = vld [vmem:[%s3 + $0x284] sm:$0xf]
    %v738 = vld [vmem:[%s3 + $0x288] sm:$0xf]
    %v739 = vld [vmem:[%s3 + $0x28c] sm:$0xf]
    %v740 = vld [vmem:[%s3 + $0x290] sm:$0xf]
    %v741 = vld [vmem:[%s3 + $0x294] sm:$0xf]
    %v742 = vld [vmem:[%s3 + $0x298] sm:$0xf]
    %v743 = vld [vmem:[%s3 + $0x29c] sm:$0xf]
    %v744 = vld [vmem:[%s3 + $0x2a0] sm:$0xf]
    %v745 = vld [vmem:[%s3 + $0x2a4] sm:$0xf]
    %v746 = vld [vmem:[%s3 + $0x2a8] sm:$0xf]
    %v747 = vld [vmem:[%s3 + $0x2ac] sm:$0xf]
    %v748 = vld [vmem:[%s3 + $0x2b0] sm:$0xf]
    %v749 = vld [vmem:[%s3 + $0x2b4] sm:$0xf]
    %v750 = vld [vmem:[%s3 + $0x2b8] sm:$0xf]
    %v751 = vld [vmem:[%s3 + $0x2bc] sm:$0xf]
    %v752 = vld [vmem:[%s3 + $0x2c0] sm:$0xf]
    %v753 = vld [vmem:[%s3 + $0x2c4] sm:$0xf]
    %v754 = vld [vmem:[%s3 + $0x2c8] sm:$0xf]
    %v755 = vld [vmem:[%s3 + $0x2cc] sm:$0xf]
    %v756 = vld [vmem:[%s3 + $0x2d0] sm:$0xf]
    %v757 = vld [vmem:[%s3 + $0x2d4] sm:$0xf]
    %v758 = vld [vmem:[%s3 + $0x2d8] sm:$0xf]
    %v759 = vld [vmem:[%s3 + $0x2dc] sm:$0xf]
    %v760 = vld [vmem:[%s3 + $0x2e0] sm:$0xf]
    %v761 = vld [vmem:[%s3 + $0x2e4] sm:$0xf]
    %v762 = vld [vmem:[%s3 + $0x2e8] sm:$0xf]
    %v763 = vld [vmem:[%s3 + $0x2ec] sm:$0xf]
    %v764 = vld [vmem:[%s3 + $0x2f0] sm:$0xf]
    %v765 = vld [vmem:[%s3 + $0x2f4] sm:$0xf]
    %v766 = vld [vmem:[%s3 + $0x2f8] sm:$0xf]
    %v767 = vld [vmem:[%s3 + $0x2fc] sm:$0xf]
    %v768 = vld [vmem:[%s3 + $0x300] sm:$0xf]
    %v769 = vld [vmem:[%s3 + $0x304] sm:$0xf]
    %v770 = vld [vmem:[%s3 + $0x308] sm:$0xf]
    %v771 = vld [vmem:[%s3 + $0x30c] sm:$0xf]
    %v772 = vld [vmem:[%s3 + $0x310] sm:$0xf]
    %v773 = vld [vmem:[%s3 + $0x314] sm:$0xf]
    %v774 = vld [vmem:[%s3 + $0x318] sm:$0xf]
    %v775 = vld [vmem:[%s3 + $0x31c] sm:$0xf]
    %v776 = vld [vmem:[%s3 + $0x320] sm:$0xf]
    %v777 = vld [vmem:[%s3 + $0x324] sm:$0xf]
    %v778 = vld [vmem:[%s3 + $0x328] sm:$0xf]
    %v779 = vld [vmem:[%s3 + $0x32c] sm:$0xf]
    %v780 = vld [vmem:[%s3 + $0x330] sm:$0xf]
    %v781 = vld [vmem:[%s3 + $0x334] sm:$0xf]
    %v782 = vld [vmem:[%s3 + $0x338] sm:$0xf]
    %v783 = vld [vmem:[%s3 + $0x33c] sm:$0xf]
    %v784 = vld [vmem:[%s3 + $0x340] sm:$0xf]
    %v785 = vld [vmem:[%s3 + $0x344] sm:$0xf]
    %v786 = vld [vmem:[%s3 + $0x348] sm:$0xf]
    %v787 = vld [vmem:[%s3 + $0x34c] sm:$0xf]
    %v788 = vld [vmem:[%s3 + $0x350] sm:$0xf]
    %v789 = vld [vmem:[%s3 + $0x354] sm:$0xf]
    %v790 = vld [vmem:[%s3 + $0x358] sm:$0xf]
    %v791 = vld [vmem:[%s3 + $0x35c] sm:$0xf]
    %v792 = vld [vmem:[%s3 + $0x360] sm:$0xf]
    %v793 = vld [vmem:[%s3 + $0x364] sm:$0xf]
    %v794 = vld [vmem:[%s3 + $0x368] sm:$0xf]
    %v795 = vld [vmem:[%s3 + $0x36c] sm:$0xf]
    %v796 = vld [vmem:[%s3 + $0x370] sm:$0xf]
    %v797 = vld [vmem:[%s3 + $0x374] sm:$0xf]
    %v798 = vld [vmem:[%s3 + $0x378] sm:$0xf]
    %v799 = vld [vmem:[%s3 + $0x37c] sm:$0xf]
    %v800 = vld [vmem:[%s3 + $0x380] sm:$0xf]
    %v801 = vld [vmem:[%s3 + $0x384] sm:$0xf]
    %v802 = vld [vmem:[%s3 + $0x388] sm:$0xf]
    %v803 = vld [vmem:[%s3 + $0x38c] sm:$0xf]
    %v804 = vld [vmem:[%s3 + $0x390] sm:$0xf]
    %v805 = vld [vmem:[%s3 + $0x394] sm:$0xf]
    %v806 = vld [vmem:[%s3 + $0x398] sm:$0xf]
    %v807 = vld [vmem:[%s3 + $0x39c] sm:$0xf]
    %v808 = vld [vmem:[%s3 + $0x3a0] sm:$0xf]
    %v809 = vld [vmem:[%s3 + $0x3a4] sm:$0xf]
    %v810 = vld [vmem:[%s3 + $0x3a8] sm:$0xf]
    %v811 = vld [vmem:[%s3 + $0x3ac] sm:$0xf]
    %v812 = vld [vmem:[%s3 + $0x3b0] sm:$0xf]
    %v813 = vld [vmem:[%s3 + $0x3b4] sm:$0xf]
    %v814 = vld [vmem:[%s3 + $0x3b8] sm:$0xf]
    %v815 = vld [vmem:[%s3 + $0x3bc] sm:$0xf]
    %v816 = vld [vmem:[%s3 + $0x3c0] sm:$0xf]
    %v817 = vld [vmem:[%s3 + $0x3c4] sm:$0xf]
    %v818 = vld [vmem:[%s3 + $0x3c8] sm:$0xf]
    %v819 = vld [vmem:[%s3 + $0x3cc] sm:$0xf]
    %v820 = vld [vmem:[%s3 + $0x3d0] sm:$0xf]
    %v821 = vld [vmem:[%s3 + $0x3d4] sm:$0xf]
    %v822 = vld [vmem:[%s3 + $0x3d8] sm:$0xf]
    %v823 = vld [vmem:[%s3 + $0x3dc] sm:$0xf]
    %v824 = vld [vmem:[%s3 + $0x3e0] sm:$0xf]
    %v825 = vld [vmem:[%s3 + $0x3e4] sm:$0xf]
    %v826 = vld [vmem:[%s3 + $0x3e8] sm:$0xf]
    %v827 = vld [vmem:[%s3 + $0x3ec] sm:$0xf]
    %v828 = vld [vmem:[%s3 + $0x3f0] sm:$0xf]
    %v829 = vld [vmem:[%s3 + $0x3f4] sm:$0xf]
    %v830 = vld [vmem:[%s3 + $0x3f8] sm:$0xf]
    %v831 = vld [vmem:[%s3 + $0x3fc] sm:$0xf]
    %v832 = vld [vmem:[%s4] sm:$0x1]
    %v834 = vlaneseq
    %v835 = vshrl.u32 %v834, 7
    %v836 = vsub.s32 0, %v835
    %v837 = vrot.slane %v832, %v836
    %v1095 = vunpack.c.l.b16 %v576
    %v1096 = vunpack.c.l.b16 %v577
    %v1097 = vunpack.c.l.b16 %v578
    %v1098 = vunpack.c.l.b16 %v579
    %v1099 = vunpack.c.l.b16 %v580
    %v1100 = vunpack.c.l.b16 %v581
    %v1101 = vunpack.c.l.b16 %v582
    %v1102 = vunpack.c.l.b16 %v583
    %v1103 = vunpack.c.l.b16 %v584
    %v1104 = vunpack.c.l.b16 %v585
    %v1105 = vunpack.c.l.b16 %v586
    %v1106 = vunpack.c.l.b16 %v587
    %v1107 = vunpack.c.l.b16 %v588
    %v1108 = vunpack.c.l.b16 %v589
    %v1109 = vunpack.c.l.b16 %v590
    %v1110 = vunpack.c.l.b16 %v591
    %v1111 = vunpack.c.l.b16 %v592
    %v1112 = vunpack.c.l.b16 %v593
    %v1113 = vunpack.c.l.b16 %v594
    %v1114 = vunpack.c.l.b16 %v595
    %v1115 = vunpack.c.l.b16 %v596
    %v1116 = vunpack.c.l.b16 %v597
    %v1117 = vunpack.c.l.b16 %v598
    %v1118 = vunpack.c.l.b16 %v599
    %v1119 = vunpack.c.l.b16 %v600
    %v1120 = vunpack.c.l.b16 %v601
    %v1121 = vunpack.c.l.b16 %v602
    %v1122 = vunpack.c.l.b16 %v603
    %v1123 = vunpack.c.l.b16 %v604
    %v1124 = vunpack.c.l.b16 %v605
    %v1125 = vunpack.c.l.b16 %v606
    %v1126 = vunpack.c.l.b16 %v607
    %v1127 = vunpack.c.l.b16 %v608
    %v1128 = vunpack.c.l.b16 %v609
    %v1129 = vunpack.c.l.b16 %v610
    %v1130 = vunpack.c.l.b16 %v611
    %v1131 = vunpack.c.l.b16 %v612
    %v1132 = vunpack.c.l.b16 %v613
    %v1133 = vunpack.c.l.b16 %v614
    %v1134 = vunpack.c.l.b16 %v615
    %v1135 = vunpack.c.l.b16 %v616
    %v1136 = vunpack.c.l.b16 %v617
    %v1137 = vunpack.c.l.b16 %v618
    %v1138 = vunpack.c.l.b16 %v619
    %v1139 = vunpack.c.l.b16 %v620
    %v1140 = vunpack.c.l.b16 %v621
    %v1141 = vunpack.c.l.b16 %v622
    %v1142 = vunpack.c.l.b16 %v623
    %v1143 = vunpack.c.l.b16 %v624
    %v1144 = vunpack.c.l.b16 %v625
    %v1145 = vunpack.c.l.b16 %v626
    %v1146 = vunpack.c.l.b16 %v627
    %v1147 = vunpack.c.l.b16 %v628
    %v1148 = vunpack.c.l.b16 %v629
    %v1149 = vunpack.c.l.b16 %v630
    %v1150 = vunpack.c.l.b16 %v631
    %v1151 = vunpack.c.l.b16 %v632
    %v1152 = vunpack.c.l.b16 %v633
    %v1153 = vunpack.c.l.b16 %v634
    %v1154 = vunpack.c.l.b16 %v635
    %v1155 = vunpack.c.l.b16 %v636
    %v1156 = vunpack.c.l.b16 %v637
    %v1157 = vunpack.c.l.b16 %v638
    %v1158 = vunpack.c.l.b16 %v639
    %v1159 = vunpack.c.l.b16 %v640
    %v1160 = vunpack.c.l.b16 %v641
    %v1161 = vunpack.c.l.b16 %v642
    %v1162 = vunpack.c.l.b16 %v643
    %v1163 = vunpack.c.l.b16 %v644
    %v1164 = vunpack.c.l.b16 %v645
    %v1165 = vunpack.c.l.b16 %v646
    %v1166 = vunpack.c.l.b16 %v647
    %v1167 = vunpack.c.l.b16 %v648
    %v1168 = vunpack.c.l.b16 %v649
    %v1169 = vunpack.c.l.b16 %v650
    %v1170 = vunpack.c.l.b16 %v651
    %v1171 = vunpack.c.l.b16 %v652
    %v1172 = vunpack.c.l.b16 %v653
    %v1173 = vunpack.c.l.b16 %v654
    %v1174 = vunpack.c.l.b16 %v655
    %v1175 = vunpack.c.l.b16 %v656
    %v1176 = vunpack.c.l.b16 %v657
    %v1177 = vunpack.c.l.b16 %v658
    %v1178 = vunpack.c.l.b16 %v659
    %v1179 = vunpack.c.l.b16 %v660
    %v1180 = vunpack.c.l.b16 %v661
    %v1181 = vunpack.c.l.b16 %v662
    %v1182 = vunpack.c.l.b16 %v663
    %v1183 = vunpack.c.l.b16 %v664
    %v1184 = vunpack.c.l.b16 %v665
    %v1185 = vunpack.c.l.b16 %v666
    %v1186 = vunpack.c.l.b16 %v667
    %v1187 = vunpack.c.l.b16 %v668
    %v1188 = vunpack.c.l.b16 %v669
    %v1189 = vunpack.c.l.b16 %v670
    %v1190 = vunpack.c.l.b16 %v671
    %v1191 = vunpack.c.l.b16 %v672
    %v1192 = vunpack.c.l.b16 %v673
    %v1193 = vunpack.c.l.b16 %v674
    %v1194 = vunpack.c.l.b16 %v675
    %v1195 = vunpack.c.l.b16 %v676
    %v1196 = vunpack.c.l.b16 %v677
    %v1197 = vunpack.c.l.b16 %v678
    %v1198 = vunpack.c.l.b16 %v679
    %v1199 = vunpack.c.l.b16 %v680
    %v1200 = vunpack.c.l.b16 %v681
    %v1201 = vunpack.c.l.b16 %v682
    %v1202 = vunpack.c.l.b16 %v683
    %v1203 = vunpack.c.l.b16 %v684
    %v1204 = vunpack.c.l.b16 %v685
    %v1205 = vunpack.c.l.b16 %v686
    %v1206 = vunpack.c.l.b16 %v687
    %v1207 = vunpack.c.l.b16 %v688
    %v1208 = vunpack.c.l.b16 %v689
    %v1209 = vunpack.c.l.b16 %v690
    %v1210 = vunpack.c.l.b16 %v691
    %v1211 = vunpack.c.l.b16 %v692
    %v1212 = vunpack.c.l.b16 %v693
    %v1213 = vunpack.c.l.b16 %v694
    %v1214 = vunpack.c.l.b16 %v695
    %v1215 = vunpack.c.l.b16 %v696
    %v1216 = vunpack.c.l.b16 %v697
    %v1217 = vunpack.c.l.b16 %v698
    %v1218 = vunpack.c.l.b16 %v699
    %v1219 = vunpack.c.l.b16 %v700
    %v1220 = vunpack.c.l.b16 %v701
    %v1221 = vunpack.c.l.b16 %v702
    %v1222 = vunpack.c.l.b16 %v703
    %v1223 = vunpack.c.l.b16 %v704
    %v1224 = vunpack.c.l.b16 %v705
    %v1225 = vunpack.c.l.b16 %v706
    %v1226 = vunpack.c.l.b16 %v707
    %v1227 = vunpack.c.l.b16 %v708
    %v1228 = vunpack.c.l.b16 %v709
    %v1229 = vunpack.c.l.b16 %v710
    %v1230 = vunpack.c.l.b16 %v711
    %v1231 = vunpack.c.l.b16 %v712
    %v1232 = vunpack.c.l.b16 %v713
    %v1233 = vunpack.c.l.b16 %v714
    %v1234 = vunpack.c.l.b16 %v715
    %v1235 = vunpack.c.l.b16 %v716
    %v1236 = vunpack.c.l.b16 %v717
    %v1237 = vunpack.c.l.b16 %v718
    %v1238 = vunpack.c.l.b16 %v719
    %v1239 = vunpack.c.l.b16 %v720
    %v1240 = vunpack.c.l.b16 %v721
    %v1241 = vunpack.c.l.b16 %v722
    %v1242 = vunpack.c.l.b16 %v723
    %v1243 = vunpack.c.l.b16 %v724
    %v1244 = vunpack.c.l.b16 %v725
    %v1245 = vunpack.c.l.b16 %v726
    %v1246 = vunpack.c.l.b16 %v727
    %v1247 = vunpack.c.l.b16 %v728
    %v1248 = vunpack.c.l.b16 %v729
    %v1249 = vunpack.c.l.b16 %v730
    %v1250 = vunpack.c.l.b16 %v731
    %v1251 = vunpack.c.l.b16 %v732
    %v1252 = vunpack.c.l.b16 %v733
    %v1253 = vunpack.c.l.b16 %v734
    %v1254 = vunpack.c.l.b16 %v735
    %v1255 = vunpack.c.l.b16 %v736
    %v1256 = vunpack.c.l.b16 %v737
    %v1257 = vunpack.c.l.b16 %v738
    %v1258 = vunpack.c.l.b16 %v739
    %v1259 = vunpack.c.l.b16 %v740
    %v1260 = vunpack.c.l.b16 %v741
    %v1261 = vunpack.c.l.b16 %v742
    %v1262 = vunpack.c.l.b16 %v743
    %v1263 = vunpack.c.l.b16 %v744
    %v1264 = vunpack.c.l.b16 %v745
    %v1265 = vunpack.c.l.b16 %v746
    %v1266 = vunpack.c.l.b16 %v747
    %v1267 = vunpack.c.l.b16 %v748
    %v1268 = vunpack.c.l.b16 %v749
    %v1269 = vunpack.c.l.b16 %v750
    %v1270 = vunpack.c.l.b16 %v751
    %v1271 = vunpack.c.l.b16 %v752
    %v1272 = vunpack.c.l.b16 %v753
    %v1273 = vunpack.c.l.b16 %v754
    %v1274 = vunpack.c.l.b16 %v755
    %v1275 = vunpack.c.l.b16 %v756
    %v1276 = vunpack.c.l.b16 %v757
    %v1277 = vunpack.c.l.b16 %v758
    %v1278 = vunpack.c.l.b16 %v759
    %v1279 = vunpack.c.l.b16 %v760
    %v1280 = vunpack.c.l.b16 %v761
    %v1281 = vunpack.c.l.b16 %v762
    %v1282 = vunpack.c.l.b16 %v763
    %v1283 = vunpack.c.l.b16 %v764
    %v1284 = vunpack.c.l.b16 %v765
    %v1285 = vunpack.c.l.b16 %v766
    %v1286 = vunpack.c.l.b16 %v767
    %v1287 = vunpack.c.l.b16 %v768
    %v1288 = vunpack.c.l.b16 %v769
    %v1289 = vunpack.c.l.b16 %v770
    %v1290 = vunpack.c.l.b16 %v771
    %v1291 = vunpack.c.l.b16 %v772
    %v1292 = vunpack.c.l.b16 %v773
    %v1293 = vunpack.c.l.b16 %v774
    %v1294 = vunpack.c.l.b16 %v775
    %v1295 = vunpack.c.l.b16 %v776
    %v1296 = vunpack.c.l.b16 %v777
    %v1297 = vunpack.c.l.b16 %v778
    %v1298 = vunpack.c.l.b16 %v779
    %v1299 = vunpack.c.l.b16 %v780
    %v1300 = vunpack.c.l.b16 %v781
    %v1301 = vunpack.c.l.b16 %v782
    %v1302 = vunpack.c.l.b16 %v783
    %v1303 = vunpack.c.l.b16 %v784
    %v1304 = vunpack.c.l.b16 %v785
    %v1305 = vunpack.c.l.b16 %v786
    %v1306 = vunpack.c.l.b16 %v787
    %v1307 = vunpack.c.l.b16 %v788
    %v1308 = vunpack.c.l.b16 %v789
    %v1309 = vunpack.c.l.b16 %v790
    %v1310 = vunpack.c.l.b16 %v791
    %v1311 = vunpack.c.l.b16 %v792
    %v1312 = vunpack.c.l.b16 %v793
    %v1313 = vunpack.c.l.b16 %v794
    %v1314 = vunpack.c.l.b16 %v795
    %v1315 = vunpack.c.l.b16 %v796
    %v1316 = vunpack.c.l.b16 %v797
    %v1317 = vunpack.c.l.b16 %v798
    %v1318 = vunpack.c.l.b16 %v799
    %v1319 = vunpack.c.l.b16 %v800
    %v1320 = vunpack.c.l.b16 %v801
    %v1321 = vunpack.c.l.b16 %v802
    %v1322 = vunpack.c.l.b16 %v803
    %v1323 = vunpack.c.l.b16 %v804
    %v1324 = vunpack.c.l.b16 %v805
    %v1325 = vunpack.c.l.b16 %v806
    %v1326 = vunpack.c.l.b16 %v807
    %v1327 = vunpack.c.l.b16 %v808
    %v1328 = vunpack.c.l.b16 %v809
    %v1329 = vunpack.c.l.b16 %v810
    %v1330 = vunpack.c.l.b16 %v811
    %v1331 = vunpack.c.l.b16 %v812
    %v1332 = vunpack.c.l.b16 %v813
    %v1333 = vunpack.c.l.b16 %v814
    %v1334 = vunpack.c.l.b16 %v815
    %v1335 = vunpack.c.l.b16 %v816
    %v1336 = vunpack.c.l.b16 %v817
    %v1337 = vunpack.c.l.b16 %v818
    %v1338 = vunpack.c.l.b16 %v819
    %v1339 = vunpack.c.l.b16 %v820
    %v1340 = vunpack.c.l.b16 %v821
    %v1341 = vunpack.c.l.b16 %v822
    %v1342 = vunpack.c.l.b16 %v823
    %v1343 = vunpack.c.l.b16 %v824
    %v1344 = vunpack.c.l.b16 %v825
    %v1345 = vunpack.c.l.b16 %v826
    %v1346 = vunpack.c.l.b16 %v827
    %v1347 = vunpack.c.l.b16 %v828
    %v1348 = vunpack.c.l.b16 %v829
    %v1349 = vunpack.c.l.b16 %v830
    %v1350 = vunpack.c.l.b16 %v831
    %v1351 = vpack.c.b16 %v1096, %v1095
    %v1352 = vpack.c.b16 %v1098, %v1097
    %v1353 = vpack.c.b16 %v1100, %v1099
    %v1354 = vpack.c.b16 %v1102, %v1101
    %v1355 = vpack.c.b16 %v1104, %v1103
    %v1356 = vpack.c.b16 %v1106, %v1105
    %v1357 = vpack.c.b16 %v1108, %v1107
    %v1358 = vpack.c.b16 %v1110, %v1109
    %v1359 = vpack.c.b16 %v1112, %v1111
    %v1360 = vpack.c.b16 %v1114, %v1113
    %v1361 = vpack.c.b16 %v1116, %v1115
    %v1362 = vpack.c.b16 %v1118, %v1117
    %v1363 = vpack.c.b16 %v1120, %v1119
    %v1364 = vpack.c.b16 %v1122, %v1121
    %v1365 = vpack.c.b16 %v1124, %v1123
    %v1366 = vpack.c.b16 %v1126, %v1125
    %v1367 = vpack.c.b16 %v1128, %v1127
    %v1368 = vpack.c.b16 %v1130, %v1129
    %v1369 = vpack.c.b16 %v1132, %v1131
    %v1370 = vpack.c.b16 %v1134, %v1133
    %v1371 = vpack.c.b16 %v1136, %v1135
    %v1372 = vpack.c.b16 %v1138, %v1137
    %v1373 = vpack.c.b16 %v1140, %v1139
    %v1374 = vpack.c.b16 %v1142, %v1141
    %v1375 = vpack.c.b16 %v1144, %v1143
    %v1376 = vpack.c.b16 %v1146, %v1145
    %v1377 = vpack.c.b16 %v1148, %v1147
    %v1378 = vpack.c.b16 %v1150, %v1149
    %v1379 = vpack.c.b16 %v1152, %v1151
    %v1380 = vpack.c.b16 %v1154, %v1153
    %v1381 = vpack.c.b16 %v1156, %v1155
    %v1382 = vpack.c.b16 %v1158, %v1157
    %v1383 = vpack.c.b16 %v1160, %v1159
    %v1384 = vpack.c.b16 %v1162, %v1161
    %v1385 = vpack.c.b16 %v1164, %v1163
    %v1386 = vpack.c.b16 %v1166, %v1165
    %v1387 = vpack.c.b16 %v1168, %v1167
    %v1388 = vpack.c.b16 %v1170, %v1169
    %v1389 = vpack.c.b16 %v1172, %v1171
    %v1390 = vpack.c.b16 %v1174, %v1173
    %v1391 = vpack.c.b16 %v1176, %v1175
    %v1392 = vpack.c.b16 %v1178, %v1177
    %v1393 = vpack.c.b16 %v1180, %v1179
    %v1394 = vpack.c.b16 %v1182, %v1181
    %v1395 = vpack.c.b16 %v1184, %v1183
    %v1396 = vpack.c.b16 %v1186, %v1185
    %v1397 = vpack.c.b16 %v1188, %v1187
    %v1398 = vpack.c.b16 %v1190, %v1189
    %v1399 = vpack.c.b16 %v1192, %v1191
    %v1400 = vpack.c.b16 %v1194, %v1193
    %v1401 = vpack.c.b16 %v1196, %v1195
    %v1402 = vpack.c.b16 %v1198, %v1197
    %v1403 = vpack.c.b16 %v1200, %v1199
    %v1404 = vpack.c.b16 %v1202, %v1201
    %v1405 = vpack.c.b16 %v1204, %v1203
    %v1406 = vpack.c.b16 %v1206, %v1205
    %v1407 = vpack.c.b16 %v1208, %v1207
    %v1408 = vpack.c.b16 %v1210, %v1209
    %v1409 = vpack.c.b16 %v1212, %v1211
    %v1410 = vpack.c.b16 %v1214, %v1213
    %v1411 = vpack.c.b16 %v1216, %v1215
    %v1412 = vpack.c.b16 %v1218, %v1217
    %v1413 = vpack.c.b16 %v1220, %v1219
    %v1414 = vpack.c.b16 %v1222, %v1221
    %v1415 = vpack.c.b16 %v1224, %v1223
    %v1416 = vpack.c.b16 %v1226, %v1225
    %v1417 = vpack.c.b16 %v1228, %v1227
    %v1418 = vpack.c.b16 %v1230, %v1229
    %v1419 = vpack.c.b16 %v1232, %v1231
    %v1420 = vpack.c.b16 %v1234, %v1233
    %v1421 = vpack.c.b16 %v1236, %v1235
    %v1422 = vpack.c.b16 %v1238, %v1237
    %v1423 = vpack.c.b16 %v1240, %v1239
    %v1424 = vpack.c.b16 %v1242, %v1241
    %v1425 = vpack.c.b16 %v1244, %v1243
    %v1426 = vpack.c.b16 %v1246, %v1245
    %v1427 = vpack.c.b16 %v1248, %v1247
    %v1428 = vpack.c.b16 %v1250, %v1249
    %v1429 = vpack.c.b16 %v1252, %v1251
    %v1430 = vpack.c.b16 %v1254, %v1253
    %v1431 = vpack.c.b16 %v1256, %v1255
    %v1432 = vpack.c.b16 %v1258, %v1257
    %v1433 = vpack.c.b16 %v1260, %v1259
    %v1434 = vpack.c.b16 %v1262, %v1261
    %v1435 = vpack.c.b16 %v1264, %v1263
    %v1436 = vpack.c.b16 %v1266, %v1265
    %v1437 = vpack.c.b16 %v1268, %v1267
    %v1438 = vpack.c.b16 %v1270, %v1269
    %v1439 = vpack.c.b16 %v1272, %v1271
    %v1440 = vpack.c.b16 %v1274, %v1273
    %v1441 = vpack.c.b16 %v1276, %v1275
    %v1442 = vpack.c.b16 %v1278, %v1277
    %v1443 = vpack.c.b16 %v1280, %v1279
    %v1444 = vpack.c.b16 %v1282, %v1281
    %v1445 = vpack.c.b16 %v1284, %v1283
    %v1446 = vpack.c.b16 %v1286, %v1285
    %v1447 = vpack.c.b16 %v1288, %v1287
    %v1448 = vpack.c.b16 %v1290, %v1289
    %v1449 = vpack.c.b16 %v1292, %v1291
    %v1450 = vpack.c.b16 %v1294, %v1293
    %v1451 = vpack.c.b16 %v1296, %v1295
    %v1452 = vpack.c.b16 %v1298, %v1297
    %v1453 = vpack.c.b16 %v1300, %v1299
    %v1454 = vpack.c.b16 %v1302, %v1301
    %v1455 = vpack.c.b16 %v1304, %v1303
    %v1456 = vpack.c.b16 %v1306, %v1305
    %v1457 = vpack.c.b16 %v1308, %v1307
    %v1458 = vpack.c.b16 %v1310, %v1309
    %v1459 = vpack.c.b16 %v1312, %v1311
    %v1460 = vpack.c.b16 %v1314, %v1313
    %v1461 = vpack.c.b16 %v1316, %v1315
    %v1462 = vpack.c.b16 %v1318, %v1317
    %v1463 = vpack.c.b16 %v1320, %v1319
    %v1464 = vpack.c.b16 %v1322, %v1321
    %v1465 = vpack.c.b16 %v1324, %v1323
    %v1466 = vpack.c.b16 %v1326, %v1325
    %v1467 = vpack.c.b16 %v1328, %v1327
    %v1468 = vpack.c.b16 %v1330, %v1329
    %v1469 = vpack.c.b16 %v1332, %v1331
    %v1470 = vpack.c.b16 %v1334, %v1333
    %v1471 = vpack.c.b16 %v1336, %v1335
    %v1472 = vpack.c.b16 %v1338, %v1337
    %v1473 = vpack.c.b16 %v1340, %v1339
    %v1474 = vpack.c.b16 %v1342, %v1341
    %v1475 = vpack.c.b16 %v1344, %v1343
    %v1476 = vpack.c.b16 %v1346, %v1345
    %v1477 = vpack.c.b16 %v1348, %v1347
    %v1478 = vpack.c.b16 %v1350, %v1349
    %1607 = vmatprep.subr.bf16.mxu0 0
    %1608 = vmatpush1.bf16.msra.mxu0 %v1351
    %1609 = vmatprep.subr.bf16.mxu0 0
    %1610 = vmatpush1.bf16.msra.mxu0 %v1352
    %1611 = vmatprep.subr.bf16.mxu0 0
    %1612 = vmatpush1.bf16.msra.mxu0 %v1353
    %1613 = vmatprep.subr.bf16.mxu0 0
    %1614 = vmatpush1.bf16.msra.mxu0 %v1354
    %1615 = vmatprep.subr.bf16.mxu0 0
    %1616 = vmatpush1.bf16.msra.mxu0 %v1355
    %1617 = vmatprep.subr.bf16.mxu0 0
    %1618 = vmatpush1.bf16.msra.mxu0 %v1356
    %1619 = vmatprep.subr.bf16.mxu0 0
    %1620 = vmatpush1.bf16.msra.mxu0 %v1357
    %1621 = vmatprep.subr.bf16.mxu0 0
    %1622 = vmatpush1.bf16.msra.mxu0 %v1358
    %1623 = vmatprep.subr.bf16.mxu0 0
    %1624 = vmatpush1.bf16.msra.mxu0 %v1359
    %1625 = vmatprep.subr.bf16.mxu0 0
    %1626 = vmatpush1.bf16.msra.mxu0 %v1360
    %1627 = vmatprep.subr.bf16.mxu0 0
    %1628 = vmatpush1.bf16.msra.mxu0 %v1361
    %1629 = vmatprep.subr.bf16.mxu0 0
    %1630 = vmatpush1.bf16.msra.mxu0 %v1362
    %1631 = vmatprep.subr.bf16.mxu0 0
    %1632 = vmatpush1.bf16.msra.mxu0 %v1363
    %1633 = vmatprep.subr.bf16.mxu0 0
    %1634 = vmatpush1.bf16.msra.mxu0 %v1364
    %1635 = vmatprep.subr.bf16.mxu0 0
    %1636 = vmatpush1.bf16.msra.mxu0 %v1365
    %1637 = vmatprep.subr.bf16.mxu0 0
    %1638 = vmatpush1.bf16.msra.mxu0 %v1366
    %1639 = vmatprep.mubr.bf16.mxu0 %v561
    %1640 = vmatmul.mubr.bf16.gmra.mrb[0].mxu0 %v560
    %v1641 = vpop.f32.mrb[0].mxu0
    %v1642 = vadd.f32 %v837, %v1641
    %v1643 = vpop.f32.mrb[0].mxu0
    %v1644 = vpop.f32.mrb[0].mxu0
    %v1645 = vpop.f32.mrb[0].mxu0
    %1646 = vdwg.mxu0
    %1647 = vmatprep.subr.bf16.mxu0 0
    %1648 = vmatpush1.bf16.msra.mxu0 %v1367
    %1649 = vmatprep.subr.bf16.mxu0 0
    %1650 = vmatpush1.bf16.msra.mxu0 %v1368
    %1651 = vmatprep.subr.bf16.mxu0 0
    %1652 = vmatpush1.bf16.msra.mxu0 %v1369
    %1653 = vmatprep.subr.bf16.mxu0 0
    %1654 = vmatpush1.bf16.msra.mxu0 %v1370
    %1655 = vmatprep.subr.bf16.mxu0 0
    %1656 = vmatpush1.bf16.msra.mxu0 %v1371
    %1657 = vmatprep.subr.bf16.mxu0 0
    %1658 = vmatpush1.bf16.msra.mxu0 %v1372
    %1659 = vmatprep.subr.bf16.mxu0 0
    %1660 = vmatpush1.bf16.msra.mxu0 %v1373
    %1661 = vmatprep.subr.bf16.mxu0 0
    %1662 = vmatpush1.bf16.msra.mxu0 %v1374
    %1663 = vmatprep.subr.bf16.mxu0 0
    %1664 = vmatpush1.bf16.msra.mxu0 %v1375
    %1665 = vmatprep.subr.bf16.mxu0 0
    %1666 = vmatpush1.bf16.msra.mxu0 %v1376
    %1667 = vmatprep.subr.bf16.mxu0 0
    %1668 = vmatpush1.bf16.msra.mxu0 %v1377
    %1669 = vmatprep.subr.bf16.mxu0 0
    %1670 = vmatpush1.bf16.msra.mxu0 %v1378
    %1671 = vmatprep.subr.bf16.mxu0 0
    %1672 = vmatpush1.bf16.msra.mxu0 %v1379
    %1673 = vmatprep.subr.bf16.mxu0 0
    %1674 = vmatpush1.bf16.msra.mxu0 %v1380
    %1675 = vmatprep.subr.bf16.mxu0 0
    %1676 = vmatpush1.bf16.msra.mxu0 %v1381
    %1677 = vmatprep.subr.bf16.mxu0 0
    %1678 = vmatpush1.bf16.msra.mxu0 %v1382
    %1679 = vmatprep.mubr.bf16.mxu0 %v563
    %1680 = vmatmul.mubr.bf16.gmra.mrb[0].mxu0 %v562
    %v1681 = vpop.f32.mrb[0].mxu0
    %v1682 = vadd.f32 %v1642, %v1681
    %v1683 = vpop.f32.mrb[0].mxu0
    %v1684 = vpop.f32.mrb[0].mxu0
    %v1685 = vpop.f32.mrb[0].mxu0
    %1686 = vdwg.mxu0
    %1687 = vmatprep.subr.bf16.mxu0 0
    %1688 = vmatpush1.bf16.msra.mxu0 %v1383
    %1689 = vmatprep.subr.bf16.mxu0 0
    %1690 = vmatpush1.bf16.msra.mxu0 %v1384
    %1691 = vmatprep.subr.bf16.mxu0 0
    %1692 = vmatpush1.bf16.msra.mxu0 %v1385
    %1693 = vmatprep.subr.bf16.mxu0 0
    %1694 = vmatpush1.bf16.msra.mxu0 %v1386
    %1695 = vmatprep.subr.bf16.mxu0 0
    %1696 = vmatpush1.bf16.msra.mxu0 %v1387
    %1697 = vmatprep.subr.bf16.mxu0 0
    %1698 = vmatpush1.bf16.msra.mxu0 %v1388
    %1699 = vmatprep.subr.bf16.mxu0 0
    %1700 = vmatpush1.bf16.msra.mxu0 %v1389
    %1701 = vmatprep.subr.bf16.mxu0 0
    %1702 = vmatpush1.bf16.msra.mxu0 %v1390
    %1703 = vmatprep.subr.bf16.mxu0 0
    %1704 = vmatpush1.bf16.msra.mxu0 %v1391
    %1705 = vmatprep.subr.bf16.mxu0 0
    %1706 = vmatpush1.bf16.msra.mxu0 %v1392
    %1707 = vmatprep.subr.bf16.mxu0 0
    %1708 = vmatpush1.bf16.msra.mxu0 %v1393
    %1709 = vmatprep.subr.bf16.mxu0 0
    %1710 = vmatpush1.bf16.msra.mxu0 %v1394
    %1711 = vmatprep.subr.bf16.mxu0 0
    %1712 = vmatpush1.bf16.msra.mxu0 %v1395
    %1713 = vmatprep.subr.bf16.mxu0 0
    %1714 = vmatpush1.bf16.msra.mxu0 %v1396
    %1715 = vmatprep.subr.bf16.mxu0 0
    %1716 = vmatpush1.bf16.msra.mxu0 %v1397
    %1717 = vmatprep.subr.bf16.mxu0 0
    %1718 = vmatpush1.bf16.msra.mxu0 %v1398
    %1719 = vmatprep.mubr.bf16.mxu0 %v565
    %1720 = vmatmul.mubr.bf16.gmra.mrb[0].mxu0 %v564
    %v1721 = vpop.f32.mrb[0].mxu0
    %v1722 = vadd.f32 %v1682, %v1721
    %v1723 = vpop.f32.mrb[0].mxu0
    %v1724 = vpop.f32.mrb[0].mxu0
    %v1725 = vpop.f32.mrb[0].mxu0
    %1726 = vdwg.mxu0
    %1727 = vmatprep.subr.bf16.mxu0 0
    %1728 = vmatpush1.bf16.msra.mxu0 %v1399
    %1729 = vmatprep.subr.bf16.mxu0 0
    %1730 = vmatpush1.bf16.msra.mxu0 %v1400
    %1731 = vmatprep.subr.bf16.mxu0 0
    %1732 = vmatpush1.bf16.msra.mxu0 %v1401
    %1733 = vmatprep.subr.bf16.mxu0 0
    %1734 = vmatpush1.bf16.msra.mxu0 %v1402
    %1735 = vmatprep.subr.bf16.mxu0 0
    %1736 = vmatpush1.bf16.msra.mxu0 %v1403
    %1737 = vmatprep.subr.bf16.mxu0 0
    %1738 = vmatpush1.bf16.msra.mxu0 %v1404
    %1739 = vmatprep.subr.bf16.mxu0 0
    %1740 = vmatpush1.bf16.msra.mxu0 %v1405
    %1741 = vmatprep.subr.bf16.mxu0 0
    %1742 = vmatpush1.bf16.msra.mxu0 %v1406
    %1743 = vmatprep.subr.bf16.mxu0 0
    %1744 = vmatpush1.bf16.msra.mxu0 %v1407
    %1745 = vmatprep.subr.bf16.mxu0 0
    %1746 = vmatpush1.bf16.msra.mxu0 %v1408
    %1747 = vmatprep.subr.bf16.mxu0 0
    %1748 = vmatpush1.bf16.msra.mxu0 %v1409
    %1749 = vmatprep.subr.bf16.mxu0 0
    %1750 = vmatpush1.bf16.msra.mxu0 %v1410
    %1751 = vmatprep.subr.bf16.mxu0 0
    %1752 = vmatpush1.bf16.msra.mxu0 %v1411
    %1753 = vmatprep.subr.bf16.mxu0 0
    %1754 = vmatpush1.bf16.msra.mxu0 %v1412
    %1755 = vmatprep.subr.bf16.mxu0 0
    %1756 = vmatpush1.bf16.msra.mxu0 %v1413
    %1757 = vmatprep.subr.bf16.mxu0 0
    %1758 = vmatpush1.bf16.msra.mxu0 %v1414
    %1759 = vmatprep.mubr.bf16.mxu0 %v567
    %1760 = vmatmul.mubr.bf16.gmra.mrb[0].mxu0 %v566
    %v1761 = vpop.f32.mrb[0].mxu0
    %v1762 = vadd.f32 %v1722, %v1761
    %v1763 = vpop.f32.mrb[0].mxu0
    %v1764 = vpop.f32.mrb[0].mxu0
    %v1765 = vpop.f32.mrb[0].mxu0
    %1766 = vdwg.mxu0
    %1767 = vmatprep.subr.bf16.mxu0 0
    %1768 = vmatpush1.bf16.msra.mxu0 %v1415
    %1769 = vmatprep.subr.bf16.mxu0 0
    %1770 = vmatpush1.bf16.msra.mxu0 %v1416
    %1771 = vmatprep.subr.bf16.mxu0 0
    %1772 = vmatpush1.bf16.msra.mxu0 %v1417
    %1773 = vmatprep.subr.bf16.mxu0 0
    %1774 = vmatpush1.bf16.msra.mxu0 %v1418
    %1775 = vmatprep.subr.bf16.mxu0 0
    %1776 = vmatpush1.bf16.msra.mxu0 %v1419
    %1777 = vmatprep.subr.bf16.mxu0 0
    %1778 = vmatpush1.bf16.msra.mxu0 %v1420
    %1779 = vmatprep.subr.bf16.mxu0 0
    %1780 = vmatpush1.bf16.msra.mxu0 %v1421
    %1781 = vmatprep.subr.bf16.mxu0 0
    %1782 = vmatpush1.bf16.msra.mxu0 %v1422
    %1783 = vmatprep.subr.bf16.mxu0 0
    %1784 = vmatpush1.bf16.msra.mxu0 %v1423
    %1785 = vmatprep.subr.bf16.mxu0 0
    %1786 = vmatpush1.bf16.msra.mxu0 %v1424
    %1787 = vmatprep.subr.bf16.mxu0 0
    %1788 = vmatpush1.bf16.msra.mxu0 %v1425
    %1789 = vmatprep.subr.bf16.mxu0 0
    %1790 = vmatpush1.bf16.msra.mxu0 %v1426
    %1791 = vmatprep.subr.bf16.mxu0 0
    %1792 = vmatpush1.bf16.msra.mxu0 %v1427
    %1793 = vmatprep.subr.bf16.mxu0 0
    %1794 = vmatpush1.bf16.msra.mxu0 %v1428
    %1795 = vmatprep.subr.bf16.mxu0 0
    %1796 = vmatpush1.bf16.msra.mxu0 %v1429
    %1797 = vmatprep.subr.bf16.mxu0 0
    %1798 = vmatpush1.bf16.msra.mxu0 %v1430
    %1799 = vmatprep.mubr.bf16.mxu0 %v569
    %1800 = vmatmul.mubr.bf16.gmra.mrb[0].mxu0 %v568
    %v1801 = vpop.f32.mrb[0].mxu0
    %v1802 = vadd.f32 %v1762, %v1801
    %v1803 = vpop.f32.mrb[0].mxu0
    %v1804 = vpop.f32.mrb[0].mxu0
    %v1805 = vpop.f32.mrb[0].mxu0
    %1806 = vdwg.mxu0
    %1807 = vmatprep.subr.bf16.mxu0 0
    %1808 = vmatpush1.bf16.msra.mxu0 %v1431
    %1809 = vmatprep.subr.bf16.mxu0 0
    %1810 = vmatpush1.bf16.msra.mxu0 %v1432
    %1811 = vmatprep.subr.bf16.mxu0 0
    %1812 = vmatpush1.bf16.msra.mxu0 %v1433
    %1813 = vmatprep.subr.bf16.mxu0 0
    %1814 = vmatpush1.bf16.msra.mxu0 %v1434
    %1815 = vmatprep.subr.bf16.mxu0 0
    %1816 = vmatpush1.bf16.msra.mxu0 %v1435
    %1817 = vmatprep.subr.bf16.mxu0 0
    %1818 = vmatpush1.bf16.msra.mxu0 %v1436
    %1819 = vmatprep.subr.bf16.mxu0 0
    %1820 = vmatpush1.bf16.msra.mxu0 %v1437
    %1821 = vmatprep.subr.bf16.mxu0 0
    %1822 = vmatpush1.bf16.msra.mxu0 %v1438
    %1823 = vmatprep.subr.bf16.mxu0 0
    %1824 = vmatpush1.bf16.msra.mxu0 %v1439
    %1825 = vmatprep.subr.bf16.mxu0 0
    %1826 = vmatpush1.bf16.msra.mxu0 %v1440
    %1827 = vmatprep.subr.bf16.mxu0 0
    %1828 = vmatpush1.bf16.msra.mxu0 %v1441
    %1829 = vmatprep.subr.bf16.mxu0 0
    %1830 = vmatpush1.bf16.msra.mxu0 %v1442
    %1831 = vmatprep.subr.bf16.mxu0 0
    %1832 = vmatpush1.bf16.msra.mxu0 %v1443
    %1833 = vmatprep.subr.bf16.mxu0 0
    %1834 = vmatpush1.bf16.msra.mxu0 %v1444
    %1835 = vmatprep.subr.bf16.mxu0 0
    %1836 = vmatpush1.bf16.msra.mxu0 %v1445
    %1837 = vmatprep.subr.bf16.mxu0 0
    %1838 = vmatpush1.bf16.msra.mxu0 %v1446
    %1839 = vmatprep.mubr.bf16.mxu0 %v571
    %1840 = vmatmul.mubr.bf16.gmra.mrb[0].mxu0 %v570
    %v1841 = vpop.f32.mrb[0].mxu0
    %v1842 = vadd.f32 %v1802, %v1841
    %v1843 = vpop.f32.mrb[0].mxu0
    %v1844 = vpop.f32.mrb[0].mxu0
    %v1845 = vpop.f32.mrb[0].mxu0
    %1846 = vdwg.mxu0
    %1847 = vmatprep.subr.bf16.mxu0 0
    %1848 = vmatpush1.bf16.msra.mxu0 %v1447
    %1849 = vmatprep.subr.bf16.mxu0 0
    %1850 = vmatpush1.bf16.msra.mxu0 %v1448
    %1851 = vmatprep.subr.bf16.mxu0 0
    %1852 = vmatpush1.bf16.msra.mxu0 %v1449
    %1853 = vmatprep.subr.bf16.mxu0 0
    %1854 = vmatpush1.bf16.msra.mxu0 %v1450
    %1855 = vmatprep.subr.bf16.mxu0 0
    %1856 = vmatpush1.bf16.msra.mxu0 %v1451
    %1857 = vmatprep.subr.bf16.mxu0 0
    %1858 = vmatpush1.bf16.msra.mxu0 %v1452
    %1859 = vmatprep.subr.bf16.mxu0 0
    %1860 = vmatpush1.bf16.msra.mxu0 %v1453
    %1861 = vmatprep.subr.bf16.mxu0 0
    %1862 = vmatpush1.bf16.msra.mxu0 %v1454
    %1863 = vmatprep.subr.bf16.mxu0 0
    %1864 = vmatpush1.bf16.msra.mxu0 %v1455
    %1865 = vmatprep.subr.bf16.mxu0 0
    %1866 = vmatpush1.bf16.msra.mxu0 %v1456
    %1867 = vmatprep.subr.bf16.mxu0 0
    %1868 = vmatpush1.bf16.msra.mxu0 %v1457
    %1869 = vmatprep.subr.bf16.mxu0 0
    %1870 = vmatpush1.bf16.msra.mxu0 %v1458
    %1871 = vmatprep.subr.bf16.mxu0 0
    %1872 = vmatpush1.bf16.msra.mxu0 %v1459
    %1873 = vmatprep.subr.bf16.mxu0 0
    %1874 = vmatpush1.bf16.msra.mxu0 %v1460
    %1875 = vmatprep.subr.bf16.mxu0 0
    %1876 = vmatpush1.bf16.msra.mxu0 %v1461
    %1877 = vmatprep.subr.bf16.mxu0 0
    %1878 = vmatpush1.bf16.msra.mxu0 %v1462
    %1879 = vmatprep.mubr.bf16.mxu0 %v573
    %1880 = vmatmul.mubr.bf16.gmra.mrb[0].mxu0 %v572
    %v1881 = vpop.f32.mrb[0].mxu0
    %v1882 = vadd.f32 %v1842, %v1881
    %v1883 = vpop.f32.mrb[0].mxu0
    %v1884 = vpop.f32.mrb[0].mxu0
    %v1885 = vpop.f32.mrb[0].mxu0
    %1886 = vdwg.mxu0
    %1887 = vmatprep.subr.bf16.mxu0 0
    %1888 = vmatpush1.bf16.msra.mxu0 %v1463
    %1889 = vmatprep.subr.bf16.mxu0 0
    %1890 = vmatpush1.bf16.msra.mxu0 %v1464
    %1891 = vmatprep.subr.bf16.mxu0 0
    %1892 = vmatpush1.bf16.msra.mxu0 %v1465
    %1893 = vmatprep.subr.bf16.mxu0 0
    %1894 = vmatpush1.bf16.msra.mxu0 %v1466
    %1895 = vmatprep.subr.bf16.mxu0 0
    %1896 = vmatpush1.bf16.msra.mxu0 %v1467
    %1897 = vmatprep.subr.bf16.mxu0 0
    %1898 = vmatpush1.bf16.msra.mxu0 %v1468
    %1899 = vmatprep.subr.bf16.mxu0 0
    %1900 = vmatpush1.bf16.msra.mxu0 %v1469
    %1901 = vmatprep.subr.bf16.mxu0 0
    %1902 = vmatpush1.bf16.msra.mxu0 %v1470
    %1903 = vmatprep.subr.bf16.mxu0 0
    %1904 = vmatpush1.bf16.msra.mxu0 %v1471
    %1905 = vmatprep.subr.bf16.mxu0 0
    %1906 = vmatpush1.bf16.msra.mxu0 %v1472
    %1907 = vmatprep.subr.bf16.mxu0 0
    %1908 = vmatpush1.bf16.msra.mxu0 %v1473
    %1909 = vmatprep.subr.bf16.mxu0 0
    %1910 = vmatpush1.bf16.msra.mxu0 %v1474
    %1911 = vmatprep.subr.bf16.mxu0 0
    %1912 = vmatpush1.bf16.msra.mxu0 %v1475
    %1913 = vmatprep.subr.bf16.mxu0 0
    %1914 = vmatpush1.bf16.msra.mxu0 %v1476
    %1915 = vmatprep.subr.bf16.mxu0 0
    %1916 = vmatpush1.bf16.msra.mxu0 %v1477
    %1917 = vmatprep.subr.bf16.mxu0 0
    %1918 = vmatpush1.bf16.msra.mxu0 %v1478
    %1919 = vmatprep.mubr.bf16.mxu0 %v575
    %1920 = vmatmul.mubr.bf16.gmra.mrb[0].mxu0 %v574
    %v1921 = vpop.f32.mrb[0].mxu0
    %v1922 = vadd.f32 %v1882, %v1921
    %v1923 = vpop.f32.mrb[0].mxu0
    %v1924 = vpop.f32.mrb[0].mxu0
    %v1925 = vpop.f32.mrb[0].mxu0
    %1926 = vdwg.mxu0
    %v1927 = vmax.f32 %v1922, 0.0
    %v1928 = vpack.c.bf16 %v1927, %v1927
    %v1929 = vld [vmem:[%s5] sm:$0xf]
    %v1930 = vld [vmem:[%s5 + $0x4] sm:$0xf]
    %v1931 = vld [vmem:[%s5 + $0x8] sm:$0xf]
    %v1932 = vld [vmem:[%s5 + $0xc] sm:$0xf]
    %v1933 = vld [vmem:[%s6] sm:$0x1]
    %v1935 = vlaneseq
    %v1936 = vshrl.u32 %v1935, 7
    %v1937 = vsub.s32 0, %v1936
    %v1938 = vrot.slane %v1933, %v1937
    %v1944 = vunpack.c.l.b16 %v1929
    %v1945 = vunpack.c.l.b16 %v1930
    %v1946 = vunpack.c.l.b16 %v1931
    %v1947 = vunpack.c.l.b16 %v1932
    %v1948 = vpack.c.b16 %v1945, %v1944
    %v1949 = vpack.c.b16 %v1947, %v1946
    %vm1952 = vcmask 261120
    %v1954 = vsel %vm1952, %v1928, 0
    %1956 = vmatprep.subr.bf16.mxu0 0
    %1957 = vmatpush1.bf16.msra.mxu0 %v1948
    %1958 = vmatprep.subr.bf16.mxu0 0
    %1959 = vmatpush1.bf16.msra.mxu0 %v1949
    %1960 = vmatprep.subr.bf16.mxu0 0
    %1961 = vmatpush1.bf16.msra.mxu0 0
    %1962 = vmatprep.subr.bf16.mxu0 0
    %1963 = vmatpush1.bf16.msra.mxu0 0
    %1964 = vmatprep.subr.bf16.mxu0 0
    %1965 = vmatpush1.bf16.msra.mxu0 0
    %1966 = vmatprep.subr.bf16.mxu0 0
    %1967 = vmatpush1.bf16.msra.mxu0 0
    %1968 = vmatprep.subr.bf16.mxu0 0
    %1969 = vmatpush1.bf16.msra.mxu0 0
    %1970 = vmatprep.subr.bf16.mxu0 0
    %1971 = vmatpush1.bf16.msra.mxu0 0
    %1972 = vmatprep.subr.bf16.mxu0 0
    %1973 = vmatpush1.bf16.msra.mxu0 0
    %1974 = vmatprep.subr.bf16.mxu0 0
    %1975 = vmatpush1.bf16.msra.mxu0 0
    %1976 = vmatprep.subr.bf16.mxu0 0
    %1977 = vmatpush1.bf16.msra.mxu0 0
    %1978 = vmatprep.subr.bf16.mxu0 0
    %1979 = vmatpush1.bf16.msra.mxu0 0
    %1980 = vmatprep.subr.bf16.mxu0 0
    %1981 = vmatpush1.bf16.msra.mxu0 0
    %1982 = vmatprep.subr.bf16.mxu0 0
    %1983 = vmatpush1.bf16.msra.mxu0 0
    %1984 = vmatprep.subr.bf16.mxu0 0
    %1985 = vmatpush1.bf16.msra.mxu0 0
    %1986 = vmatprep.subr.bf16.mxu0 0
    %1987 = vmatpush1.bf16.msra.mxu0 0
    %1988 = vmatprep.mubr.bf16.mxu0 0
    %1989 = vmatmul.mubr.bf16.gmra.mrb[0].mxu0 %v1954
    %v1990 = vpop.f32.mrb[0].mxu0
    %v1991 = vadd.f32 %v1938, %v1990
    %v1992 = vpop.f32.mrb[0].mxu0
    %v1993 = vpop.f32.mrb[0].mxu0
    %v1994 = vpop.f32.mrb[0].mxu0
    %1995 = vdwg.mxu0
    %1996 = vst [vmem:[#allocation3] sm:$0x3] %v1991
    // Predicated region
    $region30: #{verbose_forward.1} parent=1 // pred_check
      _
    $region31: #{verbose_forward.1} parent=1 // pred_check_branch
      %1998 = sbr.rel (0) target = $region33
    $region32: #{verbose_forward.1} parent=1 // pred_region
      %s2000 = ssub.s32 32, 32
      %2001 = vsyncadd [#allocation4], %s2000
      %s2003 = sshll.u32 [#allocation3], 4
      %s2004 = int_to_ptr.vmem [resolvable:$true] %s2003
      %2006 = dma.vmem_to_hbm [thread:$0]  %s2004, 32, %s7, [#allocation4]
    $region33: #{verbose_forward.1} parent=1 // pred_fallthru
      _
    // Predicated region
    $region34: #{verbose_forward.1} parent=1 // pred_check
      _
    $region35: #{verbose_forward.1} parent=1 // pred_check_branch
      %2008 = sbr.rel (0) target = $region37
    $region36: #{verbose_forward.1} parent=1 // pred_region
      %2009 = dma.done [#allocation4], 32
    $region37: #{verbose_forward.1} parent=1 // pred_fallthru
      _
    %2010 = vsyncpa [#allocation4], 1

</llo_original>
